<compile_context>
chip_gen: v7x
topology: tpu7x:2x2x1
jax: 0.10.0
libtpu: 0.0.40
codegen_flags: <defaults>
</compile_context>

<pallas_src>
import functools

import jax
import jax.numpy as jnp
from jax.experimental import pallas as pl
from jax.experimental.pallas import tpu as pltpu

# TODO(synk): DGL GATConv default slope is 0.2; torch F.leaky_relu default is 0.01.
NEG_SLOPE_DEFAULT = 0.2
_MASK_VAL = -1e30
_FUSED_MAX_NODES = 512           # small-problem fast path threshold (whole graph resident)


def _round_up(x, m):
    return (x + m - 1) // m * m


# ----------------------------------------------------------------------------
# Small-problem fast path: both GraphLayers + residual in ONE kernel, grid=(1,).
# Uses the factored-exp softmax (O(n) exps) and keeps every tensor resident.
# ----------------------------------------------------------------------------
def _fused_two_layer_kernel(x_ref, w1_ref, a1_ref, w2_ref, a2_ref,
                            mask_ref, gate_ref, o_ref, *, negative_slope):
    ns = negative_slope
    x_f32 = x_ref[...]                               # (n_pad, d_pad) f32
    mask = mask_ref[...]                             # (1, n_pad): 0 valid / -1e30 pad

    def gat(x_bf16, w_ref, a_ref):
        z = jnp.dot(x_bf16, w_ref[...], preferred_element_type=jnp.float32)   # MXU
        a_dst = a_ref[1:2, :]                                                 # (1, d_pad)
        t = jnp.sum(z * a_dst, axis=-1, keepdims=True)                        # (n, 1)
        # source scores as a lane-dense row: (2, d) x (n, d)^T -> (2, n); row 0 = a_src.z
        sa = jax.lax.dot_general(a_ref[...], z, (((1,), (1,)), ((), ())),
                                 preferred_element_type=jnp.float32)
        s_row = sa[0:1, :] + mask                                             # (1, n)
        # exact softmax, exp factored through leaky_relu's piecewise linearity
        m_s = jnp.max(s_row)                                                  # scalar
        u = t + m_s                                                           # (n, 1)
        m_i = jnp.where(u >= 0.0, u, ns * u)                                  # exact row max
        et_pos = jnp.exp(u - m_i)
        et_neg = jnp.exp(ns * u - m_i)
        es_pos = jnp.exp(s_row - m_s)                                         # pads -> 0
        es_neg = jnp.exp(ns * (s_row - m_s))                                  # pads -> 0
        sign = (t + s_row) >= 0.0
        p = jnp.where(sign, et_pos * es_pos, et_neg * es_neg)                 # (n, n)
        l = jnp.sum(p, axis=-1, keepdims=True)
        acc = jnp.dot(p.astype(jnp.bfloat16), z.astype(jnp.bfloat16),
                      preferred_element_type=jnp.float32)
        return acc / l

    h1 = gat(x_f32.astype(jnp.bfloat16), w1_ref, a1_ref)
    h2 = gat(h1.astype(jnp.bfloat16), w2_ref, a2_ref)
    # residual: all_stu_emb rows of the concatenated input, selected by the row gate
    o_ref[...] = h2 + gate_ref[...] * x_f32


def _fused_call(x_pad, w1, a1, w2, a2, mask_row, gate_col, negative_slope):
    n_pad, d_pad = x_pad.shape
    return pl.pallas_call(
        functools.partial(_fused_two_layer_kernel, negative_slope=negative_slope),
        out_shape=jax.ShapeDtypeStruct((n_pad, d_pad), jnp.float32),
        grid=(1,),
        in_specs=[
            pl.BlockSpec((n_pad, d_pad), lambda i: (0, 0)),
            pl.BlockSpec((d_pad, d_pad), lambda i: (0, 0)),
            pl.BlockSpec((2, d_pad), lambda i: (0, 0)),
            pl.BlockSpec((d_pad, d_pad), lambda i: (0, 0)),
            pl.BlockSpec((2, d_pad), lambda i: (0, 0)),
            pl.BlockSpec((1, n_pad), lambda i: (0, 0)),
            pl.BlockSpec((n_pad, 1), lambda i: (0, 0)),
        ],
        out_specs=pl.BlockSpec((n_pad, d_pad), lambda i: (0, 0)),
        compiler_params=pltpu.CompilerParams(
            dimension_semantics=("arbitrary",),
            vmem_limit_bytes=32 * 1024 * 1024),   # explicit: v5e default scope is 16 MiB
    )(x_pad, w1, a1, w2, a2, mask_row, gate_col)


# ----------------------------------------------------------------------------
# Tiled path, kernel 1 (prologue): per row tile, z = X @ W (bf16 MXU, f32 acc)
# and the packed score pair st = [z.a_src, z.a_dst]  (one (bm,2) output).
# ----------------------------------------------------------------------------
def _prologue_kernel(x_ref, w_ref, a_ref, z_ref, st_ref):
    x = x_ref[...].astype(jnp.bfloat16)
    z = jnp.dot(x, w_ref[...], preferred_element_type=jnp.float32)            # (bm, d_pad)
    a_src = a_ref[0:1, :]
    a_dst = a_ref[1:2, :]
    st_ref[:, 0:1] = jnp.sum(z * a_src, axis=-1, keepdims=True)               # s
    st_ref[:, 1:2] = jnp.sum(z * a_dst, axis=-1, keepdims=True)               # t
    z_ref[...] = z.astype(jnp.bfloat16)


def _prologue(x_pad, w_bf16, a_pad, bm):
    n_pad, d_pad = x_pad.shape
    return pl.pallas_call(
        _prologue_kernel,
        out_shape=(
            jax.ShapeDtypeStruct((n_pad, d_pad), jnp.bfloat16),               # z
            jax.ShapeDtypeStruct((n_pad, 2), jnp.float32),                    # [s, t]
        ),
        grid=(n_pad // bm,),
        in_specs=[
            pl.BlockSpec((bm, d_pad), lambda i: (i, 0)),
            pl.BlockSpec((d_pad, d_pad), lambda i: (0, 0)),
            pl.BlockSpec((2, d_pad), lambda i: (0, 0)),
        ],
        out_specs=(
            pl.BlockSpec((bm, d_pad), lambda i: (i, 0)),
            pl.BlockSpec((bm, 2), lambda i: (i, 0)),
        ),
        compiler_params=pltpu.CompilerParams(dimension_semantics=("parallel",)),
    )(x_pad, w_bf16, a_pad)


# ----------------------------------------------------------------------------
# Tiled path, kernel 2: attention with the exp already factored out of the tile.
#   p[i,j] = where(t_i + s_j >= 0, et_pos_i * es_pos_j, et_neg_i * es_neg_j)   (exact)
#   h[i]   = (sum_j p[i,j] z_j) / (sum_j p[i,j])
# z is VMEM-resident across the j loop when it fits; optional fused residual.
# ----------------------------------------------------------------------------
def _flash_gat_kernel(*refs, bn, z_resident, add_residual):
    if add_residual:
        dvec_ref, svec_ref, z_ref, res_ref, o_ref, l_sc, acc_sc = refs
    else:
        dvec_ref, svec_ref, z_ref, o_ref, l_sc, acc_sc = refs
        res_ref = None

    j = pl.program_id(1)

    @pl.when(j == 0)
    def _():
        l_sc[...] = jnp.zeros_like(l_sc)
        acc_sc[...] = jnp.zeros_like(acc_sc)

    t_col = dvec_ref[:, 0:1]                                       # (bm, 1)
    et_pos = dvec_ref[:, 1:2]
    et_neg = dvec_ref[:, 2:3]
    s_row = svec_ref[0:1, :]                                       # (1, bn) (pads = -1e30)
    es_pos = svec_ref[1:2, :]                                      # (pads = 0)
    es_neg = svec_ref[2:3, :]

    sign = (t_col + s_row) >= 0.0                                  # (bm, bn)
    p = jnp.where(sign, et_pos * es_pos, et_neg * es_neg)          # (bm, bn) f32, no exp

    l_sc[...] += jnp.sum(p, axis=-1, keepdims=True)

    if z_resident:
        off = pl.multiple_of(j * bn, bn)
        z_chunk = z_ref[pl.ds(off, bn), :]                         # slice resident z
    else:
        z_chunk = z_ref[...]

    acc_sc[...] += jnp.dot(p.astype(jnp.bfloat16), z_chunk,
                           preferred_element_type=jnp.float32)

    @pl.when(j == pl.num_programs(1) - 1)
    def _():
        out = acc_sc[...] / l_sc[...]                              # exact, once per tile
        if add_residual:
            out = out + res_ref[...]
        o_ref[...] = out.astype(o_ref.dtype)


def _flash_gat(dvec, svec, z_bf16, residual, *, bm, bn, out_dtype):
    n_pad, d_pad = z_bf16.shape
    add_residual = residual is not None
    z_bytes = n_pad * d_pad * 2
    # keep resident z (x2 buffers) + working set well under v7x's 64 MiB physical VMEM
    z_resident = z_bytes <= 12 * 1024 * 1024

    if z_resident:
        z_spec = pl.BlockSpec((n_pad, d_pad), lambda i, j: (0, 0))
    else:
        z_spec = pl.BlockSpec((bn, d_pad), lambda i, j: (j, 0))

    in_specs = [
        pl.BlockSpec((bm, 3), lambda i, j: (i, 0)),                # [t, et_pos, et_neg]
        pl.BlockSpec((3, bn), lambda i, j: (0, j)),                # [s, es_pos, es_neg]
        z_spec,
    ]
    args = [dvec, svec, z_bf16]
    if add_residual:
        in_specs.append(pl.BlockSpec((bm, d_pad), lambda i, j: (i, 0)))
        args.append(residual)

    vmem_limit = (2 * z_bytes if z_resident else 0) + 24 * 1024 * 1024

    return pl.pallas_call(
        functools.partial(_flash_gat_kernel, bn=bn, z_resident=z_resident,
                          add_residual=add_residual),
        out_shape=jax.ShapeDtypeStruct((n_pad, d_pad), out_dtype),
        grid=(n_pad // bm, n_pad // bn),
        in_specs=in_specs,
        out_specs=pl.BlockSpec((bm, d_pad), lambda i, j: (i, 0)),
        scratch_shapes=[
            pltpu.VMEM((bm, 1), jnp.float32),                      # denominator
            pltpu.VMEM((bm, d_pad), jnp.float32),                  # output accumulator
        ],
        compiler_params=pltpu.CompilerParams(
            dimension_semantics=("parallel", "arbitrary"),
            vmem_limit_bytes=int(vmem_limit)),
    )(*args)


def _graph_layer_tiled(x_pad, w_bf16, a_pad, n_valid, *, bm, bn,
                       negative_slope, out_dtype, residual=None):
    """One dense GAT-style GraphLayer = prologue + factored-exp attention kernel."""
    n_pad, _ = x_pad.shape
    ns = negative_slope
    z, st = _prologue(x_pad, w_bf16, a_pad, bm)
    s = st[:, 0]
    t = st[:, 1]

    valid = jnp.arange(n_pad) < n_valid
    s_m = jnp.where(valid, s, _MASK_VAL)                           # mask padded sources
    m_s = jnp.max(s_m)                                             # max valid source score
    u = t + m_s
    m_i = jnp.where(u >= 0.0, u, ns * u)                           # exact row max (leaky monotone)
    # all exponentials are <= 1 by construction (no overflow); O(n) exps total
    dvec = jnp.stack([t, jnp.exp(u - m_i), jnp.exp(ns * u - m_i)], axis=1)      # (n_pad, 3)
    svec = jnp.stack([s_m, jnp.exp(s_m - m_s), jnp.exp(ns * (s_m - m_s))], axis=0)  # (3, n_pad)

    return _flash_gat(dvec.astype(jnp.float32), svec.astype(jnp.float32), z,
                      residual, bm=bm, bn=bn, out_dtype=out_dtype)


# ----------------------------------------------------------------------------
# ExpressionSingleEva.forward
# ----------------------------------------------------------------------------
def expression_single_eva_forward(exer_emb, all_stu_emb, params, exer_n,
                                  negative_slope=NEG_SLOPE_DEFAULT):
    assert exer_emb.shape[0] == exer_n
    student_n, d = all_stu_emb.shape

    # e_u_graph = torch.cat((exer_emb, all_stu_emb), dim=0)
    x = jnp.concatenate([exer_emb, all_stu_emb], axis=0).astype(jnp.float32)
    n = x.shape[0]
    d_pad = _round_up(max(d, 128), 128)                            # lane-dense feature axis

    def pad_w(w):
        return (jnp.zeros((d_pad, d_pad), jnp.float32)
                .at[:d, :d].set(w).astype(jnp.bfloat16))

    def pad_a(a_src, a_dst):
        a = jnp.stack([a_src, a_dst], axis=0)                      # (2, d)
        return jnp.zeros((2, d_pad), jnp.float32).at[:, :d].set(a)

    w1, a1 = pad_w(params["w_d1"]), pad_a(params["a_d1_src"], params["a_d1_dst"])
    w2, a2 = pad_w(params["w_d2"]), pad_a(params["a_d2_src"], params["a_d2_dst"])

    # NOTE: the reference computes u_from_e(e_u_graph) and immediately overwrites it;
    # the dead layer is removed here instead of being translated.

    if n <= _FUSED_MAX_NODES:
        # -------- small-problem fast path: one fused kernel, everything resident --------
        n_pad = _round_up(max(n, 128), 128)
        x_pad = jnp.zeros((n_pad, d_pad), jnp.float32).at[:n, :d].set(x)
        rows = jnp.arange(n_pad)
        mask = jnp.where(rows < n, 0.0, _MASK_VAL).astype(jnp.float32).reshape(1, n_pad)
        gate = ((rows >= exer_n) & (rows < n)).astype(jnp.float32).reshape(n_pad, 1)
        out = _fused_call(x_pad, w1, a1, w2, a2, mask, gate, negative_slope)
        return out[exer_n:exer_n + student_n, :d]

    # -------- tiled path for large graphs --------
    bm, bn = 256, 512                                              # dest / source tiles
    n_pad = _round_up(n, max(bm, bn))
    x_pad = jnp.zeros((n_pad, d_pad), jnp.float32).at[:n, :d].set(x)

    # layer 1: inter-layer activation kept in bf16 (halves HBM traffic)
    h1 = _graph_layer_tiled(x_pad, w1, a1, n, bm=bm, bn=bn,
                            negative_slope=negative_slope, out_dtype=jnp.bfloat16)

    # layer 2: residual `all_stu_emb + h2[exer_n:]` fused into the epilogue
    res_full = (jnp.zeros((n_pad, d_pad), jnp.float32)
                .at[exer_n:n, :d].set(all_stu_emb))
    h2 = _graph_layer_tiled(h1, w2, a2, n, bm=bm, bn=bn,
                            negative_slope=negative_slope, out_dtype=jnp.float32,
                            residual=res_full)
    return h2[exer_n:exer_n + student_n, :d]


# ----------------------------------------------------------------------------
# Pure-JAX reference (same synthesized dense 2-layer GAT, same mixed precision)
# ----------------------------------------------------------------------------
def _reference_forward(exer_emb, all_stu_emb, params, exer_n,
                       negative_slope=NEG_SLOPE_DEFAULT):
    x = jnp.concatenate([exer_emb, all_stu_emb], axis=0).astype(jnp.float32)

    def gat(x, w, a_src, a_dst):
        z = jnp.dot(x.astype(jnp.bfloat16), w.astype(jnp.bfloat16),
                    preferred_element_type=jnp.float32)
        s = z @ a_src
        t = z @ a_dst
        e = t[:, None] + s[None, :]
        e = jnp.where(e >= 0.0, e, negative_slope * e)
        p = jax.nn.softmax(e, axis=-1)
        return jnp.dot(p.astype(jnp.bfloat16), z.astype(jnp.bfloat16),
                       preferred_element_type=jnp.float32)

    h1 = gat(x, params["w_d1"], params["a_d1_src"], params["a_d1_dst"])
    h2 = gat(h1, params["w_d2"], params["a_d2_src"], params["a_d2_dst"])
    return all_stu_emb + h2[exer_n:]


# ----------------------------------------------------------------------------
# Deterministic parameter construction (synthetic, no checkpoint load)
# ----------------------------------------------------------------------------
def make_params(key, knowledge_dim):
    d = knowledge_dim
    keys = jax.random.split(key, 6)
    scale = 1.0 / jnp.sqrt(jnp.float32(d))
    return {
        "w_d1":     jax.random.normal(keys[0], (d, d), jnp.float32) * scale,
        "a_d1_src": jax.random.normal(keys[1], (d,), jnp.float32) * scale,
        "a_d1_dst": jax.random.normal(keys[2], (d,), jnp.float32) * scale,
        "w_d2":     jax.random.normal(keys[3], (d, d), jnp.float32) * scale,
        "a_d2_src": jax.random.normal(keys[4], (d,), jnp.float32) * scale,
        "a_d2_dst": jax.random.normal(keys[5], (d,), jnp.float32) * scale,
    }


if __name__ == "__main__":
    def run_case(exer_n, student_n, knowledge_dim, key):
        k_exer, k_stu, k_params = jax.random.split(key, 3)
        exer_emb = jax.random.normal(k_exer, (exer_n, knowledge_dim), jnp.float32)
        all_stu_emb = jax.random.normal(k_stu, (student_n, knowledge_dim), jnp.float32)
        params = make_params(k_params, knowledge_dim)

        fwd = jax.jit(functools.partial(expression_single_eva_forward, exer_n=exer_n))
        out = jax.block_until_ready(fwd(exer_emb, all_stu_emb, params))

        assert out.shape == (student_n, knowledge_dim), out.shape
        assert out.dtype == jnp.float32
        assert bool(jnp.all(jnp.isfinite(out)))

        ref = _reference_forward(exer_emb, all_stu_emb, params, exer_n)
        rel = jnp.linalg.norm(out - ref) / (jnp.linalg.norm(ref) + 1e-6)
        assert float(rel) < 3e-2, f"relative error too large: {float(rel)}"
        return out

    # Small shapes consistent with the module -> fused single-kernel fast path.
    run_case(exer_n=8, student_n=8, knowledge_dim=32, key=jax.random.PRNGKey(0))
    # Larger graph -> tiled path (resident bf16 z, factored-exp softmax, fused residual).
    run_case(exer_n=300, student_n=300, knowledge_dim=32, key=jax.random.PRNGKey(1))

    print("KERNEL_OK")
</pallas_src>

<mosaic_0001>
module attributes {stable_mosaic.version = 11 : i64} {
  func.func @_fused_two_layer_kernel(%arg0: i32, %arg1: memref<128x128xf32, #tpu.memory_space<vmem>>, %arg2: memref<128x128xbf16, #tpu.memory_space<vmem>>, %arg3: memref<2x128xf32, #tpu.memory_space<vmem>>, %arg4: memref<128x128xbf16, #tpu.memory_space<vmem>>, %arg5: memref<2x128xf32, #tpu.memory_space<vmem>>, %arg6: memref<1x128xf32, #tpu.memory_space<vmem>>, %arg7: memref<128x1xf32, #tpu.memory_space<vmem>>, %arg8: memref<128x128xf32, #tpu.memory_space<vmem>>) attributes {dimension_semantics = [#tpu.dimension_semantics<arbitrary>], iteration_bounds = array<i64: 1>, scalar_prefetch = 0 : i64, scratch_operands = 0 : i64, tpu.core_type = #tpu.core_type<tc>, window_params = [{pipeline_mode = #tpu.pipeline_mode<synchronous>, transform_indices = @transform_0, window_bounds = array<i64: 128, 128>}, {pipeline_mode = #tpu.pipeline_mode<synchronous>, transform_indices = @transform_1, window_bounds = array<i64: 128, 128>}, {pipeline_mode = #tpu.pipeline_mode<synchronous>, transform_indices = @transform_2, window_bounds = array<i64: 2, 128>}, {pipeline_mode = #tpu.pipeline_mode<synchronous>, transform_indices = @transform_3, window_bounds = array<i64: 128, 128>}, {pipeline_mode = #tpu.pipeline_mode<synchronous>, transform_indices = @transform_4, window_bounds = array<i64: 2, 128>}, {pipeline_mode = #tpu.pipeline_mode<synchronous>, transform_indices = @transform_5, window_bounds = array<i64: 1, 128>}, {pipeline_mode = #tpu.pipeline_mode<synchronous>, transform_indices = @transform_6, window_bounds = array<i64: 128, 1>}, {pipeline_mode = #tpu.pipeline_mode<synchronous>, transform_indices = @transform_7, window_bounds = array<i64: 128, 128>}]} {
    %c0 = arith.constant 0 : index
    %c0_0 = arith.constant 0 : index
    %0 = vector.load %arg1[%c0, %c0_0] : memref<128x128xf32, #tpu.memory_space<vmem>>, vector<128x128xf32>
    %c0_1 = arith.constant 0 : index
    %c0_2 = arith.constant 0 : index
    %1 = vector.load %arg6[%c0_1, %c0_2] : memref<1x128xf32, #tpu.memory_space<vmem>>, vector<1x128xf32>
    %2 = arith.truncf %0 : vector<128x128xf32> to vector<128x128xbf16>
    %c0_3 = arith.constant 0 : index
    %c0_4 = arith.constant 0 : index
    %3 = vector.load %arg2[%c0_3, %c0_4] : memref<128x128xbf16, #tpu.memory_space<vmem>>, vector<128x128xbf16>
    %cst = arith.constant dense<0.000000e+00> : vector<128x128xf32>
    %4 = tpu.matmul %2, %3, %cst {dimension_numbers = #tpu.dot_dimension_numbers<[1], [0], [0], [1], [0, 0, 1, 1], [], []>} : vector<128x128xbf16>, vector<128x128xbf16>, vector<128x128xf32> -> vector<128x128xf32>
    %c1 = arith.constant 1 : index
    %c0_5 = arith.constant 0 : index
    %5 = vector.load %arg3[%c1, %c0_5] : memref<2x128xf32, #tpu.memory_space<vmem>>, vector<1x128xf32>
    %6 = vector.broadcast %5 : vector<1x128xf32> to vector<128x128xf32>
    %7 = arith.mulf %4, %6 : vector<128x128xf32>
    %cst_6 = arith.constant dense<0.000000e+00> : vector<128xf32>
    %8 = vector.multi_reduction <add>, %7, %cst_6 [1] : vector<128x128xf32> to vector<128xf32>
    %9 = vector.shape_cast %8 : vector<128xf32> to vector<128x1xf32>
    %c0_7 = arith.constant 0 : index
    %c0_8 = arith.constant 0 : index
    %10 = vector.load %arg3[%c0_7, %c0_8] : memref<2x128xf32, #tpu.memory_space<vmem>>, vector<2x128xf32>
    %cst_9 = arith.constant dense<0.000000e+00> : vector<2x128xf32>
    %11 = tpu.matmul %10, %4, %cst_9 {dimension_numbers = #tpu.dot_dimension_numbers<[1], [1], [0], [0], [0, 0, 1, 0], [], []>} : vector<2x128xf32>, vector<128x128xf32>, vector<2x128xf32> -> vector<2x128xf32>
    %12 = vector.extract_strided_slice %11 {offsets = [0, 0], sizes = [1, 128], strides = [1, 1]} : vector<2x128xf32> to vector<1x128xf32>
    %13 = arith.addf %12, %1 : vector<1x128xf32>
    %14 = vector.shape_cast %13 : vector<1x128xf32> to vector<1x1x128xf32>
    %cst_10 = arith.constant dense<0xFF800000> : vector<1xf32>
    %15 = vector.multi_reduction <maximumf>, %14, %cst_10 [1, 2] : vector<1x1x128xf32> to vector<1xf32>
    %16 = vector.shape_cast %15 : vector<1xf32> to vector<1x1x1xf32>
    %17 = vector.extract %16[0, 0, 0] : f32 from vector<1x1x1xf32>
    %18 = vector.broadcast %17 : f32 to vector<128x1xf32>
    %19 = arith.addf %9, %18 : vector<128x1xf32>
    %cst_11 = arith.constant 0.000000e+00 : f32
    %20 = vector.broadcast %cst_11 : f32 to vector<128x1xf32>
    %21 = arith.cmpf oge, %19, %20 : vector<128x1xf32>
    %cst_12 = arith.constant 2.000000e-01 : f32
    %22 = vector.broadcast %cst_12 : f32 to vector<128x1xf32>
    %23 = arith.mulf %22, %19 : vector<128x1xf32>
    %24 = arith.select %21, %19, %23 : vector<128x1xi1>, vector<128x1xf32>
    %25 = arith.subf %19, %24 : vector<128x1xf32>
    %26 = math.exp %25 : vector<128x1xf32>
    %cst_13 = arith.constant 2.000000e-01 : f32
    %27 = vector.broadcast %cst_13 : f32 to vector<128x1xf32>
    %28 = arith.mulf %27, %19 : vector<128x1xf32>
    %29 = arith.subf %28, %24 : vector<128x1xf32>
    %30 = math.exp %29 : vector<128x1xf32>
    %31 = vector.broadcast %17 : f32 to vector<1x128xf32>
    %32 = arith.subf %13, %31 : vector<1x128xf32>
    %33 = math.exp %32 : vector<1x128xf32>
    %34 = vector.broadcast %17 : f32 to vector<1x128xf32>
    %35 = arith.subf %13, %34 : vector<1x128xf32>
    %cst_14 = arith.constant 2.000000e-01 : f32
    %36 = vector.broadcast %cst_14 : f32 to vector<1x128xf32>
    %37 = arith.mulf %36, %35 : vector<1x128xf32>
    %38 = math.exp %37 : vector<1x128xf32>
    %39 = vector.broadcast %9 : vector<128x1xf32> to vector<128x128xf32>
    %40 = vector.broadcast %13 : vector<1x128xf32> to vector<128x128xf32>
    %41 = arith.addf %39, %40 : vector<128x128xf32>
    %cst_15 = arith.constant 0.000000e+00 : f32
    %42 = vector.broadcast %cst_15 : f32 to vector<128x128xf32>
    %43 = arith.cmpf oge, %41, %42 : vector<128x128xf32>
    %44 = vector.broadcast %26 : vector<128x1xf32> to vector<128x128xf32>
    %45 = vector.broadcast %33 : vector<1x128xf32> to vector<128x128xf32>
    %46 = arith.mulf %44, %45 : vector<128x128xf32>
    %47 = vector.broadcast %30 : vector<128x1xf32> to vector<128x128xf32>
    %48 = vector.broadcast %38 : vector<1x128xf32> to vector<128x128xf32>
    %49 = arith.mulf %47, %48 : vector<128x128xf32>
    %50 = arith.select %43, %46, %49 : vector<128x128xi1>, vector<128x128xf32>
    %cst_16 = arith.constant dense<0.000000e+00> : vector<128xf32>
    %51 = vector.multi_reduction <add>, %50, %cst_16 [1] : vector<128x128xf32> to vector<128xf32>
    %52 = vector.shape_cast %51 : vector<128xf32> to vector<128x1xf32>
    %53 = arith.truncf %50 : vector<128x128xf32> to vector<128x128xbf16>
    %54 = arith.truncf %4 : vector<128x128xf32> to vector<128x128xbf16>
    %cst_17 = arith.constant dense<0.000000e+00> : vector<128x128xf32>
    %55 = tpu.matmul %53, %54, %cst_17 {dimension_numbers = #tpu.dot_dimension_numbers<[1], [0], [0], [1], [0, 0, 1, 1], [], []>} : vector<128x128xbf16>, vector<128x128xbf16>, vector<128x128xf32> -> vector<128x128xf32>
    %56 = vector.broadcast %52 : vector<128x1xf32> to vector<128x128xf32>
    %57 = arith.divf %55, %56 : vector<128x128xf32>
    %58 = arith.truncf %57 : vector<128x128xf32> to vector<128x128xbf16>
    %c0_18 = arith.constant 0 : index
    %c0_19 = arith.constant 0 : index
    %59 = vector.load %arg4[%c0_18, %c0_19] : memref<128x128xbf16, #tpu.memory_space<vmem>>, vector<128x128xbf16>
    %cst_20 = arith.constant dense<0.000000e+00> : vector<128x128xf32>
    %60 = tpu.matmul %58, %59, %cst_20 {dimension_numbers = #tpu.dot_dimension_numbers<[1], [0], [0], [1], [0, 0, 1, 1], [], []>} : vector<128x128xbf16>, vector<128x128xbf16>, vector<128x128xf32> -> vector<128x128xf32>
    %c1_21 = arith.constant 1 : index
    %c0_22 = arith.constant 0 : index
    %61 = vector.load %arg5[%c1_21, %c0_22] : memref<2x128xf32, #tpu.memory_space<vmem>>, vector<1x128xf32>
    %62 = vector.broadcast %61 : vector<1x128xf32> to vector<128x128xf32>
    %63 = arith.mulf %60, %62 : vector<128x128xf32>
    %cst_23 = arith.constant dense<0.000000e+00> : vector<128xf32>
    %64 = vector.multi_reduction <add>, %63, %cst_23 [1] : vector<128x128xf32> to vector<128xf32>
    %65 = vector.shape_cast %64 : vector<128xf32> to vector<128x1xf32>
    %c0_24 = arith.constant 0 : index
    %c0_25 = arith.constant 0 : index
    %66 = vector.load %arg5[%c0_24, %c0_25] : memref<2x128xf32, #tpu.memory_space<vmem>>, vector<2x128xf32>
    %cst_26 = arith.constant dense<0.000000e+00> : vector<2x128xf32>
    %67 = tpu.matmul %66, %60, %cst_26 {dimension_numbers = #tpu.dot_dimension_numbers<[1], [1], [0], [0], [0, 0, 1, 0], [], []>} : vector<2x128xf32>, vector<128x128xf32>, vector<2x128xf32> -> vector<2x128xf32>
    %68 = vector.extract_strided_slice %67 {offsets = [0, 0], sizes = [1, 128], strides = [1, 1]} : vector<2x128xf32> to vector<1x128xf32>
    %69 = arith.addf %68, %1 : vector<1x128xf32>
    %70 = vector.shape_cast %69 : vector<1x128xf32> to vector<1x1x128xf32>
    %cst_27 = arith.constant dense<0xFF800000> : vector<1xf32>
    %71 = vector.multi_reduction <maximumf>, %70, %cst_27 [1, 2] : vector<1x1x128xf32> to vector<1xf32>
    %72 = vector.shape_cast %71 : vector<1xf32> to vector<1x1x1xf32>
    %73 = vector.extract %72[0, 0, 0] : f32 from vector<1x1x1xf32>
    %74 = vector.broadcast %73 : f32 to vector<128x1xf32>
    %75 = arith.addf %65, %74 : vector<128x1xf32>
    %cst_28 = arith.constant 0.000000e+00 : f32
    %76 = vector.broadcast %cst_28 : f32 to vector<128x1xf32>
    %77 = arith.cmpf oge, %75, %76 : vector<128x1xf32>
    %cst_29 = arith.constant 2.000000e-01 : f32
    %78 = vector.broadcast %cst_29 : f32 to vector<128x1xf32>
    %79 = arith.mulf %78, %75 : vector<128x1xf32>
    %80 = arith.select %77, %75, %79 : vector<128x1xi1>, vector<128x1xf32>
    %81 = arith.subf %75, %80 : vector<128x1xf32>
    %82 = math.exp %81 : vector<128x1xf32>
    %cst_30 = arith.constant 2.000000e-01 : f32
    %83 = vector.broadcast %cst_30 : f32 to vector<128x1xf32>
    %84 = arith.mulf %83, %75 : vector<128x1xf32>
    %85 = arith.subf %84, %80 : vector<128x1xf32>
    %86 = math.exp %85 : vector<128x1xf32>
    %87 = vector.broadcast %73 : f32 to vector<1x128xf32>
    %88 = arith.subf %69, %87 : vector<1x128xf32>
    %89 = math.exp %88 : vector<1x128xf32>
    %90 = vector.broadcast %73 : f32 to vector<1x128xf32>
    %91 = arith.subf %69, %90 : vector<1x128xf32>
    %cst_31 = arith.constant 2.000000e-01 : f32
    %92 = vector.broadcast %cst_31 : f32 to vector<1x128xf32>
    %93 = arith.mulf %92, %91 : vector<1x128xf32>
    %94 = math.exp %93 : vector<1x128xf32>
    %95 = vector.broadcast %65 : vector<128x1xf32> to vector<128x128xf32>
    %96 = vector.broadcast %69 : vector<1x128xf32> to vector<128x128xf32>
    %97 = arith.addf %95, %96 : vector<128x128xf32>
    %cst_32 = arith.constant 0.000000e+00 : f32
    %98 = vector.broadcast %cst_32 : f32 to vector<128x128xf32>
    %99 = arith.cmpf oge, %97, %98 : vector<128x128xf32>
    %100 = vector.broadcast %82 : vector<128x1xf32> to vector<128x128xf32>
    %101 = vector.broadcast %89 : vector<1x128xf32> to vector<128x128xf32>
    %102 = arith.mulf %100, %101 : vector<128x128xf32>
    %103 = vector.broadcast %86 : vector<128x1xf32> to vector<128x128xf32>
    %104 = vector.broadcast %94 : vector<1x128xf32> to vector<128x128xf32>
    %105 = arith.mulf %103, %104 : vector<128x128xf32>
    %106 = arith.select %99, %102, %105 : vector<128x128xi1>, vector<128x128xf32>
    %cst_33 = arith.constant dense<0.000000e+00> : vector<128xf32>
    %107 = vector.multi_reduction <add>, %106, %cst_33 [1] : vector<128x128xf32> to vector<128xf32>
    %108 = vector.shape_cast %107 : vector<128xf32> to vector<128x1xf32>
    %109 = arith.truncf %106 : vector<128x128xf32> to vector<128x128xbf16>
    %110 = arith.truncf %60 : vector<128x128xf32> to vector<128x128xbf16>
    %cst_34 = arith.constant dense<0.000000e+00> : vector<128x128xf32>
    %111 = tpu.matmul %109, %110, %cst_34 {dimension_numbers = #tpu.dot_dimension_numbers<[1], [0], [0], [1], [0, 0, 1, 1], [], []>} : vector<128x128xbf16>, vector<128x128xbf16>, vector<128x128xf32> -> vector<128x128xf32>
    %112 = vector.broadcast %108 : vector<128x1xf32> to vector<128x128xf32>
    %113 = arith.divf %111, %112 : vector<128x128xf32>
    %c0_35 = arith.constant 0 : index
    %c0_36 = arith.constant 0 : index
    %114 = vector.load %arg7[%c0_35, %c0_36] : memref<128x1xf32, #tpu.memory_space<vmem>>, vector<128x1xf32>
    %115 = vector.broadcast %114 : vector<128x1xf32> to vector<128x128xf32>
    %116 = arith.mulf %115, %0 : vector<128x128xf32>
    %117 = arith.addf %113, %116 : vector<128x128xf32>
    %c0_37 = arith.constant 0 : index
    %c0_38 = arith.constant 0 : index
    %118 = vector.load %arg8[%c0_37, %c0_38] : memref<128x128xf32, #tpu.memory_space<vmem>>, vector<128x128xf32>
    tpu.vector_store %arg8[%c0_37, %c0_38], %117 {strides = array<i32>} : memref<128x128xf32, #tpu.memory_space<vmem>>, vector<128x128xf32>,
    return
  }
  func.func @transform_0(%arg0: i32) -> (i32, i32) {
    %c0_i32 = arith.constant 0 : i32
    %c0_i32_0 = arith.constant 0 : i32
    %c0_i32_1 = arith.constant 0 : i32
    return %c0_i32, %c0_i32_0 : i32, i32
  }
  func.func @transform_1(%arg0: i32) -> (i32, i32) {
    %c0_i32 = arith.constant 0 : i32
    %c0_i32_0 = arith.constant 0 : i32
    %c0_i32_1 = arith.constant 0 : i32
    return %c0_i32, %c0_i32_0 : i32, i32
  }
  func.func @transform_2(%arg0: i32) -> (i32, i32) {
    %c0_i32 = arith.constant 0 : i32
    %c0_i32_0 = arith.constant 0 : i32
    %c0_i32_1 = arith.constant 0 : i32
    return %c0_i32, %c0_i32_0 : i32, i32
  }
  func.func @transform_3(%arg0: i32) -> (i32, i32) {
    %c0_i32 = arith.constant 0 : i32
    %c0_i32_0 = arith.constant 0 : i32
    %c0_i32_1 = arith.constant 0 : i32
    return %c0_i32, %c0_i32_0 : i32, i32
  }
  func.func @transform_4(%arg0: i32) -> (i32, i32) {
    %c0_i32 = arith.constant 0 : i32
    %c0_i32_0 = arith.constant 0 : i32
    %c0_i32_1 = arith.constant 0 : i32
    return %c0_i32, %c0_i32_0 : i32, i32
  }
  func.func @transform_5(%arg0: i32) -> (i32, i32) {
    %c0_i32 = arith.constant 0 : i32
    %c0_i32_0 = arith.constant 0 : i32
    %c0_i32_1 = arith.constant 0 : i32
    return %c0_i32, %c0_i32_0 : i32, i32
  }
  func.func @transform_6(%arg0: i32) -> (i32, i32) {
    %c0_i32 = arith.constant 0 : i32
    %c0_i32_0 = arith.constant 0 : i32
    %c0_i32_1 = arith.constant 0 : i32
    return %c0_i32, %c0_i32_0 : i32, i32
  }
  func.func @transform_7(%arg0: i32) -> (i32, i32) {
    %c0_i32 = arith.constant 0 : i32
    %c0_i32_0 = arith.constant 0 : i32
    %c0_i32_1 = arith.constant 0 : i32
    return %c0_i32, %c0_i32_0 : i32, i32
  }
}

</mosaic_0001>

<llo_original>
// kernel: expression_single_eva_forward.1
$region0: #{expression_single_eva_forward.1}
  #allocation0 [shape = 'u32[]', space=smem, size = 0x4, offset = 0x4, fixed_abs, tag = 'smem constant byte address 0x4 - core index']
  #allocation1 [shape = 'u32[144,128]{1,0:T(1,128)}', space=vmem, size = 0x12000, scoped, tag = 'internal scratch']
  %s0 = inlined_call_operand.vmem [shape: f32[128,128], index: 0, kind: input, shape index: {}]
  %s1 = inlined_call_operand.vmem [shape: bf16[128,128], index: 1, kind: input, shape index: {}]
  %s2 = inlined_call_operand.vmem [shape: f32[2,128], index: 2, kind: input, shape index: {}]
  %s3 = inlined_call_operand.vmem [shape: bf16[128,128], index: 3, kind: input, shape index: {}]
  %s4 = inlined_call_operand.vmem [shape: f32[2,128], index: 4, kind: input, shape index: {}]
  %s5 = inlined_call_operand.vmem [shape: f32[1,128], index: 5, kind: input, shape index: {}]
  %s6 = inlined_call_operand.vmem [shape: f32[128,1], index: 6, kind: input, shape index: {}]
  %s7 = inlined_call_operand.vmem [shape: f32[128,128], index: 7, kind: output, shape index: {}]
  %s8 = sld [smem:[#allocation0]]
  $region38: #{expression_single_eva_forward.1} parent=0
    _
  %s10 = ssub.s32 1, %s8
  %s11 = scalar_select 0, %s10, %s8
  // Predicated region
  $region2: #{expression_single_eva_forward.1} parent=0 // pred_check
    _
  $region3: #{expression_single_eva_forward.1} parent=0 // pred_check_branch
    %13 = sbr.rel (0) target = $region5
  $region4: #{expression_single_eva_forward.1} parent=0 // pred_region
    _
  $region5: #{expression_single_eva_forward.1} parent=0 // pred_fallthru
    _
  // Predicated region
  $region6: #{expression_single_eva_forward.1} parent=0 // pred_check
    _
  $region7: #{expression_single_eva_forward.1} parent=0 // pred_check_branch
    %15 = sbr.rel (0) target = $region9
  $region8: #{expression_single_eva_forward.1} parent=0 // pred_region
    _
  $region9: #{expression_single_eva_forward.1} parent=0 // pred_fallthru
    _
  // Predicated region
  $region10: #{expression_single_eva_forward.1} parent=0 // pred_check
    _
  $region11: #{expression_single_eva_forward.1} parent=0 // pred_check_branch
    %17 = sbr.rel (0) target = $region13
  $region12: #{expression_single_eva_forward.1} parent=0 // pred_region
    _
  $region13: #{expression_single_eva_forward.1} parent=0 // pred_fallthru
    _
  // Predicated region
  $region14: #{expression_single_eva_forward.1} parent=0 // pred_check
    _
  $region15: #{expression_single_eva_forward.1} parent=0 // pred_check_branch
    %19 = sbr.rel (0) target = $region17
  $region16: #{expression_single_eva_forward.1} parent=0 // pred_region
    _
  $region17: #{expression_single_eva_forward.1} parent=0 // pred_fallthru
    _
  // Predicated region
  $region18: #{expression_single_eva_forward.1} parent=0 // pred_check
    _
  $region19: #{expression_single_eva_forward.1} parent=0 // pred_check_branch
    %21 = sbr.rel (0) target = $region21
  $region20: #{expression_single_eva_forward.1} parent=0 // pred_region
    _
  $region21: #{expression_single_eva_forward.1} parent=0 // pred_fallthru
    _
  // Predicated region
  $region22: #{expression_single_eva_forward.1} parent=0 // pred_check
    _
  $region23: #{expression_single_eva_forward.1} parent=0 // pred_check_branch
    %23 = sbr.rel (0) target = $region25
  $region24: #{expression_single_eva_forward.1} parent=0 // pred_region
    _
  $region25: #{expression_single_eva_forward.1} parent=0 // pred_fallthru
    _
  // Predicated region
  $region26: #{expression_single_eva_forward.1} parent=0 // pred_check
    _
  $region27: #{expression_single_eva_forward.1} parent=0 // pred_check_branch
    %25 = sbr.rel (0) target = $region29
  $region28: #{expression_single_eva_forward.1} parent=0 // pred_region
    _
  $region29: #{expression_single_eva_forward.1} parent=0 // pred_fallthru
    _
  %v27 = vld [vmem:[%s0] sm:$0xff]
  %v28 = vld [vmem:[%s0 + $0x8] sm:$0xff]
  %v29 = vld [vmem:[%s0 + $0x10] sm:$0xff]
  %v30 = vld [vmem:[%s0 + $0x18] sm:$0xff]
  %v31 = vld [vmem:[%s0 + $0x20] sm:$0xff]
  %v32 = vld [vmem:[%s0 + $0x28] sm:$0xff]
  %v33 = vld [vmem:[%s0 + $0x30] sm:$0xff]
  %v34 = vld [vmem:[%s0 + $0x38] sm:$0xff]
  %v35 = vld [vmem:[%s0 + $0x40] sm:$0xff]
  %v36 = vld [vmem:[%s0 + $0x48] sm:$0xff]
  %v37 = vld [vmem:[%s0 + $0x50] sm:$0xff]
  %v38 = vld [vmem:[%s0 + $0x58] sm:$0xff]
  %v39 = vld [vmem:[%s0 + $0x60] sm:$0xff]
  %v40 = vld [vmem:[%s0 + $0x68] sm:$0xff]
  %v41 = vld [vmem:[%s0 + $0x70] sm:$0xff]
  %v42 = vld [vmem:[%s0 + $0x78] sm:$0xff]
  %v43 = vld [vmem:[%s5] sm:$0x1]
  %v44 = vpack.c.bf16 %v28, %v27
  %v45 = vpack.c.bf16 %v30, %v29
  %v46 = vpack.c.bf16 %v32, %v31
  %v47 = vpack.c.bf16 %v34, %v33
  %v48 = vpack.c.bf16 %v36, %v35
  %v49 = vpack.c.bf16 %v38, %v37
  %v50 = vpack.c.bf16 %v40, %v39
  %v51 = vpack.c.bf16 %v42, %v41
  %v52 = vld [vmem:[%s1] sm:$0xf]
  %v53 = vld [vmem:[%s1 + $0x4] sm:$0xf]
  %v54 = vld [vmem:[%s1 + $0x8] sm:$0xf]
  %v55 = vld [vmem:[%s1 + $0xc] sm:$0xf]
  %v56 = vld [vmem:[%s1 + $0x10] sm:$0xf]
  %v57 = vld [vmem:[%s1 + $0x14] sm:$0xf]
  %v58 = vld [vmem:[%s1 + $0x18] sm:$0xf]
  %v59 = vld [vmem:[%s1 + $0x1c] sm:$0xf]
  %v60 = vld [vmem:[%s1 + $0x20] sm:$0xf]
  %v61 = vld [vmem:[%s1 + $0x24] sm:$0xf]
  %v62 = vld [vmem:[%s1 + $0x28] sm:$0xf]
  %v63 = vld [vmem:[%s1 + $0x2c] sm:$0xf]
  %v64 = vld [vmem:[%s1 + $0x30] sm:$0xf]
  %v65 = vld [vmem:[%s1 + $0x34] sm:$0xf]
  %v66 = vld [vmem:[%s1 + $0x38] sm:$0xf]
  %v67 = vld [vmem:[%s1 + $0x3c] sm:$0xf]
  %v84 = vunpack.c.l.b16 %v52
  %v85 = vunpack.c.l.b16 %v53
  %v86 = vunpack.c.l.b16 %v54
  %v87 = vunpack.c.l.b16 %v55
  %v88 = vunpack.c.l.b16 %v56
  %v89 = vunpack.c.l.b16 %v57
  %v90 = vunpack.c.l.b16 %v58
  %v91 = vunpack.c.l.b16 %v59
  %v92 = vunpack.c.l.b16 %v60
  %v93 = vunpack.c.l.b16 %v61
  %v94 = vunpack.c.l.b16 %v62
  %v95 = vunpack.c.l.b16 %v63
  %v96 = vunpack.c.l.b16 %v64
  %v97 = vunpack.c.l.b16 %v65
  %v98 = vunpack.c.l.b16 %v66
  %v99 = vunpack.c.l.b16 %v67
  %v100 = vpack.c.b16 %v85, %v84
  %v101 = vpack.c.b16 %v87, %v86
  %v102 = vpack.c.b16 %v89, %v88
  %v103 = vpack.c.b16 %v91, %v90
  %v104 = vpack.c.b16 %v93, %v92
  %v105 = vpack.c.b16 %v95, %v94
  %v106 = vpack.c.b16 %v97, %v96
  %v107 = vpack.c.b16 %v99, %v98
  %116 = vmatprep.subr.bf16.mxu0 0
  %117 = vmatpush1.bf16.msra.mxu0 %v100
  %118 = vmatprep.subr.bf16.mxu0 0
  %119 = vmatpush1.bf16.msra.mxu0 %v101
  %120 = vmatprep.subr.bf16.mxu0 0
  %121 = vmatpush1.bf16.msra.mxu0 %v102
  %122 = vmatprep.subr.bf16.mxu0 0
  %123 = vmatpush1.bf16.msra.mxu0 %v103
  %124 = vmatprep.subr.bf16.mxu0 0
  %125 = vmatpush1.bf16.msra.mxu0 %v104
  %126 = vmatprep.subr.bf16.mxu0 0
  %127 = vmatpush1.bf16.msra.mxu0 %v105
  %128 = vmatprep.subr.bf16.mxu0 0
  %129 = vmatpush1.bf16.msra.mxu0 %v106
  %130 = vmatprep.subr.bf16.mxu0 0
  %131 = vmatpush1.bf16.msra.mxu0 %v107
  %132 = vmatprep.subr.bf16.mxu0 0
  %133 = vmatpush1.bf16.msra.mxu0 0
  %134 = vmatprep.subr.bf16.mxu0 0
  %135 = vmatpush1.bf16.msra.mxu0 0
  %136 = vmatprep.subr.bf16.mxu0 0
  %137 = vmatpush1.bf16.msra.mxu0 0
  %138 = vmatprep.subr.bf16.mxu0 0
  %139 = vmatpush1.bf16.msra.mxu0 0
  %140 = vmatprep.subr.bf16.mxu0 0
  %141 = vmatpush1.bf16.msra.mxu0 0
  %142 = vmatprep.subr.bf16.mxu0 0
  %143 = vmatpush1.bf16.msra.mxu0 0
  %144 = vmatprep.subr.bf16.mxu0 0
  %145 = vmatpush1.bf16.msra.mxu0 0
  %146 = vmatprep.subr.bf16.mxu0 0
  %147 = vmatpush1.bf16.msra.mxu0 0
  %148 = vmatprep.mubr.bf16.mxu0 0
  %149 = vmatmul.mubr.bf16.gmra.mrb[0].mxu0 %v44
  %v150 = vpop.f32.mrb[0].mxu0
  %v151 = vadd.f32 0.0, %v150
  %v152 = vpop.f32.mrb[0].mxu0
  %v153 = vpop.f32.mrb[0].mxu0
  %v154 = vadd.f32 0.0, %v153
  %v155 = vpop.f32.mrb[0].mxu0
  %156 = vmatprep.mubr.bf16.mxu0 0
  %157 = vmatmul.mubr.bf16.gmra.mrb[0].mxu0 %v45
  %v158 = vpop.f32.mrb[0].mxu0
  %v159 = vadd.f32 0.0, %v158
  %v160 = vpop.f32.mrb[0].mxu0
  %v161 = vpop.f32.mrb[0].mxu0
  %v162 = vadd.f32 0.0, %v161
  %v163 = vpop.f32.mrb[0].mxu0
  %164 = vmatprep.mubr.bf16.mxu0 0
  %165 = vmatmul.mubr.bf16.gmra.mrb[0].mxu0 %v46
  %v166 = vpop.f32.mrb[0].mxu0
  %v167 = vadd.f32 0.0, %v166
  %v168 = vpop.f32.mrb[0].mxu0
  %v169 = vpop.f32.mrb[0].mxu0
  %v170 = vadd.f32 0.0, %v169
  %v171 = vpop.f32.mrb[0].mxu0
  %172 = vmatprep.mubr.bf16.mxu0 0
  %173 = vmatmul.mubr.bf16.gmra.mrb[0].mxu0 %v47
  %v174 = vpop.f32.mrb[0].mxu0
  %v175 = vadd.f32 0.0, %v174
  %v176 = vpop.f32.mrb[0].mxu0
  %v177 = vpop.f32.mrb[0].mxu0
  %v178 = vadd.f32 0.0, %v177
  %v179 = vpop.f32.mrb[0].mxu0
  %180 = vmatprep.mubr.bf16.mxu0 0
  %181 = vmatmul.mubr.bf16.gmra.mrb[0].mxu0 %v48
  %v182 = vpop.f32.mrb[0].mxu0
  %v183 = vadd.f32 0.0, %v182
  %v184 = vpop.f32.mrb[0].mxu0
  %v185 = vpop.f32.mrb[0].mxu0
  %v186 = vadd.f32 0.0, %v185
  %v187 = vpop.f32.mrb[0].mxu0
  %188 = vmatprep.mubr.bf16.mxu0 0
  %189 = vmatmul.mubr.bf16.gmra.mrb[0].mxu0 %v49
  %v190 = vpop.f32.mrb[0].mxu0
  %v191 = vadd.f32 0.0, %v190
  %v192 = vpop.f32.mrb[0].mxu0
  %v193 = vpop.f32.mrb[0].mxu0
  %v194 = vadd.f32 0.0, %v193
  %v195 = vpop.f32.mrb[0].mxu0
  %196 = vmatprep.mubr.bf16.mxu0 0
  %197 = vmatmul.mubr.bf16.gmra.mrb[0].mxu0 %v50
  %v198 = vpop.f32.mrb[0].mxu0
  %v199 = vadd.f32 0.0, %v198
  %v200 = vpop.f32.mrb[0].mxu0
  %v201 = vpop.f32.mrb[0].mxu0
  %v202 = vadd.f32 0.0, %v201
  %v203 = vpop.f32.mrb[0].mxu0
  %204 = vmatprep.mubr.bf16.mxu0 0
  %205 = vmatmul.mubr.bf16.gmra.mrb[0].mxu0 %v51
  %v206 = vpop.f32.mrb[0].mxu0
  %v207 = vadd.f32 0.0, %v206
  %v208 = vpop.f32.mrb[0].mxu0
  %v209 = vpop.f32.mrb[0].mxu0
  %v210 = vadd.f32 0.0, %v209
  %v211 = vpop.f32.mrb[0].mxu0
  %212 = vdwg.mxu0
  %v213 = vld [vmem:[%s2 + $0x1] sm:$0x1]
  %v214 = vlaneseq
  %v215 = vshrl.u32 %v214, 7
  %v216 = vsub.s32 0, %v215
  %v217 = vrot.slane %v213, %v216
  %v218 = vmul.f32 %v151, %v217
  %v219 = vmul.f32 %v154, %v217
  %v220 = vmul.f32 %v159, %v217
  %v221 = vmul.f32 %v162, %v217
  %v222 = vmul.f32 %v167, %v217
  %v223 = vmul.f32 %v170, %v217
  %v224 = vmul.f32 %v175, %v217
  %v225 = vmul.f32 %v178, %v217
  %v226 = vmul.f32 %v183, %v217
  %v227 = vmul.f32 %v186, %v217
  %v228 = vmul.f32 %v191, %v217
  %v229 = vmul.f32 %v194, %v217
  %v230 = vmul.f32 %v199, %v217
  %v231 = vmul.f32 %v202, %v217
  %v232 = vmul.f32 %v207, %v217
  %v233 = vmul.f32 %v210, %v217
  %234 = vadd.xlane.f32.xlu0 %v218
  %v235 = vpop.xlane.xlu0 %234
  %236 = vadd.xlane.f32.xlu0 %v219
  %v237 = vpop.xlane.xlu0 %236
  %238 = vadd.xlane.f32.xlu0 %v220
  %v239 = vpop.xlane.xlu0 %238
  %240 = vadd.xlane.f32.xlu0 %v221
  %v241 = vpop.xlane.xlu0 %240
  %242 = vadd.xlane.f32.xlu0 %v222
  %v243 = vpop.xlane.xlu0 %242
  %244 = vadd.xlane.f32.xlu0 %v223
  %v245 = vpop.xlane.xlu0 %244
  %246 = vadd.xlane.f32.xlu0 %v224
  %v247 = vpop.xlane.xlu0 %246
  %248 = vadd.xlane.f32.xlu0 %v225
  %v249 = vpop.xlane.xlu0 %248
  %250 = vadd.xlane.f32.xlu0 %v226
  %v251 = vpop.xlane.xlu0 %250
  %252 = vadd.xlane.f32.xlu0 %v227
  %v253 = vpop.xlane.xlu0 %252
  %254 = vadd.xlane.f32.xlu0 %v228
  %v255 = vpop.xlane.xlu0 %254
  %256 = vadd.xlane.f32.xlu0 %v229
  %v257 = vpop.xlane.xlu0 %256
  %258 = vadd.xlane.f32.xlu0 %v230
  %v259 = vpop.xlane.xlu0 %258
  %260 = vadd.xlane.f32.xlu0 %v231
  %v261 = vpop.xlane.xlu0 %260
  %262 = vadd.xlane.f32.xlu0 %v232
  %v263 = vpop.xlane.xlu0 %262
  %264 = vadd.xlane.f32.xlu0 %v233
  %v265 = vpop.xlane.xlu0 %264
  %v266 = vld [vmem:[%s2] sm:$0x3]
  %267 = vmatprep.subr.mxu0 0.0
  %268 = vmatpush1.xpose.msra.mxu0 %v151
  %269 = vmatprep.subr.mxu0 0.0
  %270 = vmatpush1.xpose.msra.mxu0 %v154
  %271 = vmatprep.subr.mxu0 0.0
  %272 = vmatpush1.xpose.msra.mxu0 %v159
  %273 = vmatprep.subr.mxu0 0.0
  %274 = vmatpush1.xpose.msra.mxu0 %v162
  %275 = vmatprep.subr.mxu0 0.0
  %276 = vmatpush1.xpose.msra.mxu0 %v167
  %277 = vmatprep.subr.mxu0 0.0
  %278 = vmatpush1.xpose.msra.mxu0 %v170
  %279 = vmatprep.subr.mxu0 0.0
  %280 = vmatpush1.xpose.msra.mxu0 %v175
  %281 = vmatprep.subr.mxu0 0.0
  %282 = vmatpush1.xpose.msra.mxu0 %v178
  %283 = vmatprep.subr.mxu0 0.0
  %284 = vmatpush1.xpose.msra.mxu0 %v183
  %285 = vmatprep.subr.mxu0 0.0
  %286 = vmatpush1.xpose.msra.mxu0 %v186
  %287 = vmatprep.subr.mxu0 0.0
  %288 = vmatpush1.xpose.msra.mxu0 %v191
  %289 = vmatprep.subr.mxu0 0.0
  %290 = vmatpush1.xpose.msra.mxu0 %v194
  %291 = vmatprep.subr.mxu0 0.0
  %292 = vmatpush1.xpose.msra.mxu0 %v199
  %293 = vmatprep.subr.mxu0 0.0
  %294 = vmatpush1.xpose.msra.mxu0 %v202
  %295 = vmatprep.subr.mxu0 0.0
  %296 = vmatpush1.xpose.msra.mxu0 %v207
  %297 = vmatprep.subr.mxu0 0.0
  %298 = vmatpush1.xpose.msra.mxu0 %v210
  %299 = vmatprep.subr.mxu0 0.0
  %300 = vmatpush1.xpose.msra.mxu0 0.0
  %301 = vmatprep.subr.mxu0 0.0
  %302 = vmatpush1.xpose.msra.mxu0 0.0
  %303 = vmatprep.subr.mxu0 0.0
  %304 = vmatpush1.xpose.msra.mxu0 0.0
  %305 = vmatprep.subr.mxu0 0.0
  %306 = vmatpush1.xpose.msra.mxu0 0.0
  %307 = vmatprep.subr.mxu0 0.0
  %308 = vmatpush1.xpose.msra.mxu0 0.0
  %309 = vmatprep.subr.mxu0 0.0
  %310 = vmatpush1.xpose.msra.mxu0 0.0
  %311 = vmatprep.subr.mxu0 0.0
  %312 = vmatpush1.xpose.msra.mxu0 0.0
  %313 = vmatprep.subr.mxu0 0.0
  %314 = vmatpush1.xpose.msra.mxu0 0.0
  %315 = vmatprep.subr.mxu0 0.0
  %316 = vmatpush1.xpose.msra.mxu0 0.0
  %317 = vmatprep.subr.mxu0 0.0
  %318 = vmatpush1.xpose.msra.mxu0 0.0
  %319 = vmatprep.subr.mxu0 0.0
  %320 = vmatpush1.xpose.msra.mxu0 0.0
  %321 = vmatprep.subr.mxu0 0.0
  %322 = vmatpush1.xpose.msra.mxu0 0.0
  %323 = vmatprep.subr.mxu0 0.0
  %324 = vmatpush1.xpose.msra.mxu0 0.0
  %325 = vmatprep.subr.mxu0 0.0
  %326 = vmatpush1.xpose.msra.mxu0 0.0
  %327 = vmatprep.subr.mxu0 0.0
  %328 = vmatpush1.xpose.msra.mxu0 0.0
  %329 = vmatprep.subr.mxu0 0.0
  %330 = vmatpush1.xpose.msra.mxu0 0.0
  %331 = vmatprep.mubr.f32.mxu0 0.0
  %332 = vmatmul.mubr.f32.gmra.mrb[0].mxu0 %v266
  %v333 = vpop.f32.mrb[0].mxu0
  %v334 = vadd.f32 0.0, %v333
  %v335 = vpop.f32.mrb[0].mxu0
  %336 = vdwg.mxu0
  %v337 = vadd.f32 %v334, %v43
  %vm338 = vcmask 1040384
  %v339 = vsel %vm338, %v337, -inf
  %340 = vmax.xlane.f32.xlu0 %v339
  %v341 = vpop.xlane.xlu0 %340
  %v342 = vrot.slane %v341, 4
  %v343 = vmax.f32 %v341, %v342
  %v344 = vrot.slane %v343, 2
  %v345 = vmax.f32 %v343, %v344
  %v346 = vrot.slane %v345, 1
  %v347 = vmax.f32 %v345, %v346
  %s348 = vtos %v347
  %v349 = vstv %s348
  %v350 = vadd.f32 %v235, %v349
  %v351 = vadd.f32 %v237, %v349
  %v352 = vadd.f32 %v239, %v349
  %v353 = vadd.f32 %v241, %v349
  %v354 = vadd.f32 %v243, %v349
  %v355 = vadd.f32 %v245, %v349
  %v356 = vadd.f32 %v247, %v349
  %v357 = vadd.f32 %v249, %v349
  %v358 = vadd.f32 %v251, %v349
  %v359 = vadd.f32 %v253, %v349
  %v360 = vadd.f32 %v255, %v349
  %v361 = vadd.f32 %v257, %v349
  %v362 = vadd.f32 %v259, %v349
  %v363 = vadd.f32 %v261, %v349
  %v364 = vadd.f32 %v263, %v349
  %v365 = vadd.f32 %v265, %v349
  %vm366 = vcmp.ge.f32.partialorder %v350, 0.0
  %vm367 = vcmp.ge.f32.partialorder %v351, 0.0
  %vm368 = vcmp.ge.f32.partialorder %v352, 0.0
  %vm369 = vcmp.ge.f32.partialorder %v353, 0.0
  %vm370 = vcmp.ge.f32.partialorder %v354, 0.0
  %vm371 = vcmp.ge.f32.partialorder %v355, 0.0
  %vm372 = vcmp.ge.f32.partialorder %v356, 0.0
  %vm373 = vcmp.ge.f32.partialorder %v357, 0.0
  %vm374 = vcmp.ge.f32.partialorder %v358, 0.0
  %vm375 = vcmp.ge.f32.partialorder %v359, 0.0
  %vm376 = vcmp.ge.f32.partialorder %v360, 0.0
  %vm377 = vcmp.ge.f32.partialorder %v361, 0.0
  %vm378 = vcmp.ge.f32.partialorder %v362, 0.0
  %vm379 = vcmp.ge.f32.partialorder %v363, 0.0
  %vm380 = vcmp.ge.f32.partialorder %v364, 0.0
  %vm381 = vcmp.ge.f32.partialorder %v365, 0.0
  %v382 = vmul.f32 %v350, 0.2
  %v383 = vmul.f32 %v351, 0.2
  %v384 = vmul.f32 %v352, 0.2
  %v385 = vmul.f32 %v353, 0.2
  %v386 = vmul.f32 %v354, 0.2
  %v387 = vmul.f32 %v355, 0.2
  %v388 = vmul.f32 %v356, 0.2
  %v389 = vmul.f32 %v357, 0.2
  %v390 = vmul.f32 %v358, 0.2
  %v391 = vmul.f32 %v359, 0.2
  %v392 = vmul.f32 %v360, 0.2
  %v393 = vmul.f32 %v361, 0.2
  %v394 = vmul.f32 %v362, 0.2
  %v395 = vmul.f32 %v363, 0.2
  %v396 = vmul.f32 %v364, 0.2
  %v397 = vmul.f32 %v365, 0.2
  %v398 = vsel %vm366, %v350, %v382
  %v399 = vsel %vm367, %v351, %v383
  %v400 = vsel %vm368, %v352, %v384
  %v401 = vsel %vm369, %v353, %v385
  %v402 = vsel %vm370, %v354, %v386
  %v403 = vsel %vm371, %v355, %v387
  %v404 = vsel %vm372, %v356, %v388
  %v405 = vsel %vm373, %v357, %v389
  %v406 = vsel %vm374, %v358, %v390
  %v407 = vsel %vm375, %v359, %v391
  %v408 = vsel %vm376, %v360, %v392
  %v409 = vsel %vm377, %v361, %v393
  %v410 = vsel %vm378, %v362, %v394
  %v411 = vsel %vm379, %v363, %v395
  %v412 = vsel %vm380, %v364, %v396
  %v413 = vsel %vm381, %v365, %v397
  %v414 = vsub.f32 %v350, %v398
  %v415 = vsub.f32 %v351, %v399
  %v416 = vsub.f32 %v352, %v400
  %v417 = vsub.f32 %v353, %v401
  %v418 = vsub.f32 %v354, %v402
  %v419 = vsub.f32 %v355, %v403
  %v420 = vsub.f32 %v356, %v404
  %v421 = vsub.f32 %v357, %v405
  %v422 = vsub.f32 %v358, %v406
  %v423 = vsub.f32 %v359, %v407
  %v424 = vsub.f32 %v360, %v408
  %v425 = vsub.f32 %v361, %v409
  %v426 = vsub.f32 %v362, %v410
  %v427 = vsub.f32 %v363, %v411
  %v428 = vsub.f32 %v364, %v412
  %v429 = vsub.f32 %v365, %v413
  %v430 = vmul.f32 %v414, 1.442695
  %v431 = vpow.pop %v430
  %v432 = vmul.f32 %v415, 1.442695
  %v433 = vpow.pop %v432
  %v434 = vmul.f32 %v416, 1.442695
  %v435 = vpow.pop %v434
  %v436 = vmul.f32 %v417, 1.442695
  %v437 = vpow.pop %v436
  %v438 = vmul.f32 %v418, 1.442695
  %v439 = vpow.pop %v438
  %v440 = vmul.f32 %v419, 1.442695
  %v441 = vpow.pop %v440
  %v442 = vmul.f32 %v420, 1.442695
  %v443 = vpow.pop %v442
  %v444 = vmul.f32 %v421, 1.442695
  %v445 = vpow.pop %v444
  %v446 = vmul.f32 %v422, 1.442695
  %v447 = vpow.pop %v446
  %v448 = vmul.f32 %v423, 1.442695
  %v449 = vpow.pop %v448
  %v450 = vmul.f32 %v424, 1.442695
  %v451 = vpow.pop %v450
  %v452 = vmul.f32 %v425, 1.442695
  %v453 = vpow.pop %v452
  %v454 = vmul.f32 %v426, 1.442695
  %v455 = vpow.pop %v454
  %v456 = vmul.f32 %v427, 1.442695
  %v457 = vpow.pop %v456
  %v458 = vmul.f32 %v428, 1.442695
  %v459 = vpow.pop %v458
  %v460 = vmul.f32 %v429, 1.442695
  %v461 = vpow.pop %v460
  %v462 = vsub.f32 %v382, %v398
  %v463 = vsub.f32 %v383, %v399
  %v464 = vsub.f32 %v384, %v400
  %v465 = vsub.f32 %v385, %v401
  %v466 = vsub.f32 %v386, %v402
  %v467 = vsub.f32 %v387, %v403
  %v468 = vsub.f32 %v388, %v404
  %v469 = vsub.f32 %v389, %v405
  %v470 = vsub.f32 %v390, %v406
  %v471 = vsub.f32 %v391, %v407
  %v472 = vsub.f32 %v392, %v408
  %v473 = vsub.f32 %v393, %v409
  %v474 = vsub.f32 %v394, %v410
  %v475 = vsub.f32 %v395, %v411
  %v476 = vsub.f32 %v396, %v412
  %v477 = vsub.f32 %v397, %v413
  %v478 = vmul.f32 %v462, 1.442695
  %v479 = vpow.pop %v478
  %v480 = vmul.f32 %v463, 1.442695
  %v481 = vpow.pop %v480
  %v482 = vmul.f32 %v464, 1.442695
  %v483 = vpow.pop %v482
  %v484 = vmul.f32 %v465, 1.442695
  %v485 = vpow.pop %v484
  %v486 = vmul.f32 %v466, 1.442695
  %v487 = vpow.pop %v486
  %v488 = vmul.f32 %v467, 1.442695
  %v489 = vpow.pop %v488
  %v490 = vmul.f32 %v468, 1.442695
  %v491 = vpow.pop %v490
  %v492 = vmul.f32 %v469, 1.442695
  %v493 = vpow.pop %v492
  %v494 = vmul.f32 %v470, 1.442695
  %v495 = vpow.pop %v494
  %v496 = vmul.f32 %v471, 1.442695
  %v497 = vpow.pop %v496
  %v498 = vmul.f32 %v472, 1.442695
  %v499 = vpow.pop %v498
  %v500 = vmul.f32 %v473, 1.442695
  %v501 = vpow.pop %v500
  %v502 = vmul.f32 %v474, 1.442695
  %v503 = vpow.pop %v502
  %v504 = vmul.f32 %v475, 1.442695
  %v505 = vpow.pop %v504
  %v506 = vmul.f32 %v476, 1.442695
  %v507 = vpow.pop %v506
  %v508 = vmul.f32 %v477, 1.442695
  %v509 = vpow.pop %v508
  %v510 = vsub.f32 %v337, %v349
  %v511 = vmul.f32 %v510, 1.442695
  %v512 = vpow.pop %v511
  %v513 = vmul.f32 %v510, 0.2
  %v514 = vmul.f32 %v513, 1.442695
  %v515 = vpow.pop %v514
  %v516 = vlaneseq
  %v517 = vshrl.u32 %v516, 7
  %v518 = vsub.s32 0, %v517
  %v519 = vrot.slane %v337, %v518
  %v520 = vadd.f32 %v235, %v519
  %v521 = vadd.f32 %v237, %v519
  %v522 = vadd.f32 %v239, %v519
  %v523 = vadd.f32 %v241, %v519
  %v524 = vadd.f32 %v243, %v519
  %v525 = vadd.f32 %v245, %v519
  %v526 = vadd.f32 %v247, %v519
  %v527 = vadd.f32 %v249, %v519
  %v528 = vadd.f32 %v251, %v519
  %v529 = vadd.f32 %v253, %v519
  %v530 = vadd.f32 %v255, %v519
  %v531 = vadd.f32 %v257, %v519
  %v532 = vadd.f32 %v259, %v519
  %v533 = vadd.f32 %v261, %v519
  %v534 = vadd.f32 %v263, %v519
  %v535 = vadd.f32 %v265, %v519
  %vm536 = vcmp.ge.f32.partialorder %v520, 0.0
  %vm537 = vcmp.ge.f32.partialorder %v521, 0.0
  %vm538 = vcmp.ge.f32.partialorder %v522, 0.0
  %vm539 = vcmp.ge.f32.partialorder %v523, 0.0
  %vm540 = vcmp.ge.f32.partialorder %v524, 0.0
  %vm541 = vcmp.ge.f32.partialorder %v525, 0.0
  %vm542 = vcmp.ge.f32.partialorder %v526, 0.0
  %vm543 = vcmp.ge.f32.partialorder %v527, 0.0
  %vm544 = vcmp.ge.f32.partialorder %v528, 0.0
  %vm545 = vcmp.ge.f32.partialorder %v529, 0.0
  %vm546 = vcmp.ge.f32.partialorder %v530, 0.0
  %vm547 = vcmp.ge.f32.partialorder %v531, 0.0
  %vm548 = vcmp.ge.f32.partialorder %v532, 0.0
  %vm549 = vcmp.ge.f32.partialorder %v533, 0.0
  %vm550 = vcmp.ge.f32.partialorder %v534, 0.0
  %vm551 = vcmp.ge.f32.partialorder %v535, 0.0
  %v552 = vlaneseq
  %v553 = vshrl.u32 %v552, 7
  %v554 = vsub.s32 0, %v553
  %v555 = vrot.slane %v512, %v554
  %v556 = vmul.f32 %v431, %v555
  %v557 = vmul.f32 %v433, %v555
  %v558 = vmul.f32 %v435, %v555
  %v559 = vmul.f32 %v437, %v555
  %v560 = vmul.f32 %v439, %v555
  %v561 = vmul.f32 %v441, %v555
  %v562 = vmul.f32 %v443, %v555
  %v563 = vmul.f32 %v445, %v555
  %v564 = vmul.f32 %v447, %v555
  %v565 = vmul.f32 %v449, %v555
  %v566 = vmul.f32 %v451, %v555
  %v567 = vmul.f32 %v453, %v555
  %v568 = vmul.f32 %v455, %v555
  %v569 = vmul.f32 %v457, %v555
  %v570 = vmul.f32 %v459, %v555
  %v571 = vmul.f32 %v461, %v555
  %v572 = vlaneseq
  %v573 = vshrl.u32 %v572, 7
  %v574 = vsub.s32 0, %v573
  %v575 = vrot.slane %v515, %v574
  %v576 = vmul.f32 %v479, %v575
  %v577 = vmul.f32 %v481, %v575
  %v578 = vmul.f32 %v483, %v575
  %v579 = vmul.f32 %v485, %v575
  %v580 = vmul.f32 %v487, %v575
  %v581 = vmul.f32 %v489, %v575
  %v582 = vmul.f32 %v491, %v575
  %v583 = vmul.f32 %v493, %v575
  %v584 = vmul.f32 %v495, %v575
  %v585 = vmul.f32 %v497, %v575
  %v586 = vmul.f32 %v499, %v575
  %v587 = vmul.f32 %v501, %v575
  %v588 = vmul.f32 %v503, %v575
  %v589 = vmul.f32 %v505, %v575
  %v590 = vmul.f32 %v507, %v575
  %v591 = vmul.f32 %v509, %v575
  %v592 = vsel %vm536, %v556, %v576
  %v593 = vsel %vm537, %v557, %v577
  %v594 = vsel %vm538, %v558, %v578
  %v595 = vsel %vm539, %v559, %v579
  %v596 = vsel %vm540, %v560, %v580
  %v597 = vsel %vm541, %v561, %v581
  %v598 = vsel %vm542, %v562, %v582
  %v599 = vsel %vm543, %v563, %v583
  %v600 = vsel %vm544, %v564, %v584
  %v601 = vsel %vm545, %v565, %v585
  %v602 = vsel %vm546, %v566, %v586
  %v603 = vsel %vm547, %v567, %v587
  %v604 = vsel %vm548, %v568, %v588
  %v605 = vsel %vm549, %v569, %v589
  %v606 = vsel %vm550, %v570, %v590
  %v607 = vsel %vm551, %v571, %v591
  %608 = vadd.xlane.f32.xlu0 %v592
  %v609 = vpop.xlane.xlu0 %608
  %610 = vadd.xlane.f32.xlu0 %v593
  %v611 = vpop.xlane.xlu0 %610
  %612 = vadd.xlane.f32.xlu0 %v594
  %v613 = vpop.xlane.xlu0 %612
  %614 = vadd.xlane.f32.xlu0 %v595
  %v615 = vpop.xlane.xlu0 %614
  %616 = vadd.xlane.f32.xlu0 %v596
  %v617 = vpop.xlane.xlu0 %616
  %618 = vadd.xlane.f32.xlu0 %v597
  %v619 = vpop.xlane.xlu0 %618
  %620 = vadd.xlane.f32.xlu0 %v598
  %v621 = vpop.xlane.xlu0 %620
  %622 = vadd.xlane.f32.xlu0 %v599
  %v623 = vpop.xlane.xlu0 %622
  %624 = vadd.xlane.f32.xlu0 %v600
  %v625 = vpop.xlane.xlu0 %624
  %626 = vadd.xlane.f32.xlu0 %v601
  %v627 = vpop.xlane.xlu0 %626
  %628 = vadd.xlane.f32.xlu0 %v602
  %v629 = vpop.xlane.xlu0 %628
  %630 = vadd.xlane.f32.xlu0 %v603
  %v631 = vpop.xlane.xlu0 %630
  %632 = vadd.xlane.f32.xlu0 %v604
  %v633 = vpop.xlane.xlu0 %632
  %634 = vadd.xlane.f32.xlu0 %v605
  %v635 = vpop.xlane.xlu0 %634
  %636 = vadd.xlane.f32.xlu0 %v606
  %v637 = vpop.xlane.xlu0 %636
  %638 = vadd.xlane.f32.xlu0 %v607
  %v639 = vpop.xlane.xlu0 %638
  %v640 = vpack.c.bf16 %v593, %v592
  %v641 = vpack.c.bf16 %v595, %v594
  %v642 = vpack.c.bf16 %v597, %v596
  %v643 = vpack.c.bf16 %v599, %v598
  %v644 = vpack.c.bf16 %v601, %v600
  %v645 = vpack.c.bf16 %v603, %v602
  %v646 = vpack.c.bf16 %v605, %v604
  %v647 = vpack.c.bf16 %v607, %v606
  %v648 = vpack.c.bf16 %v154, %v151
  %v649 = vpack.c.bf16 %v162, %v159
  %v650 = vpack.c.bf16 %v170, %v167
  %v651 = vpack.c.bf16 %v178, %v175
  %v652 = vpack.c.bf16 %v186, %v183
  %v653 = vpack.c.bf16 %v194, %v191
  %v654 = vpack.c.bf16 %v202, %v199
  %v655 = vpack.c.bf16 %v210, %v207
  %656 = vmatprep.subr.bf16.mxu0 0
  %657 = vmatpush1.bf16.msra.mxu0 %v648
  %658 = vmatprep.subr.bf16.mxu0 0
  %659 = vmatpush1.bf16.msra.mxu0 %v649
  %660 = vmatprep.subr.bf16.mxu0 0
  %661 = vmatpush1.bf16.msra.mxu0 %v650
  %662 = vmatprep.subr.bf16.mxu0 0
  %663 = vmatpush1.bf16.msra.mxu0 %v651
  %664 = vmatprep.subr.bf16.mxu0 0
  %665 = vmatpush1.bf16.msra.mxu0 %v652
  %666 = vmatprep.subr.bf16.mxu0 0
  %667 = vmatpush1.bf16.msra.mxu0 %v653
  %668 = vmatprep.subr.bf16.mxu0 0
  %669 = vmatpush1.bf16.msra.mxu0 %v654
  %670 = vmatprep.subr.bf16.mxu0 0
  %671 = vmatpush1.bf16.msra.mxu0 %v655
  %672 = vmatprep.subr.bf16.mxu0 0
  %673 = vmatpush1.bf16.msra.mxu0 0
  %674 = vmatprep.subr.bf16.mxu0 0
  %675 = vmatpush1.bf16.msra.mxu0 0
  %676 = vmatprep.subr.bf16.mxu0 0
  %677 = vmatpush1.bf16.msra.mxu0 0
  %678 = vmatprep.subr.bf16.mxu0 0
  %679 = vmatpush1.bf16.msra.mxu0 0
  %680 = vmatprep.subr.bf16.mxu0 0
  %681 = vmatpush1.bf16.msra.mxu0 0
  %682 = vmatprep.subr.bf16.mxu0 0
  %683 = vmatpush1.bf16.msra.mxu0 0
  %684 = vmatprep.subr.bf16.mxu0 0
  %685 = vmatpush1.bf16.msra.mxu0 0
  %686 = vmatprep.subr.bf16.mxu0 0
  %687 = vmatpush1.bf16.msra.mxu0 0
  %688 = vmatprep.mubr.bf16.mxu0 0
  %689 = vmatmul.mubr.bf16.gmra.mrb[0].mxu0 %v640
  %v690 = vpop.f32.mrb[0].mxu0
  %v691 = vadd.f32 0.0, %v690
  %v692 = vpop.f32.mrb[0].mxu0
  %v693 = vpop.f32.mrb[0].mxu0
  %v694 = vadd.f32 0.0, %v693
  %v695 = vpop.f32.mrb[0].mxu0
  %696 = vmatprep.mubr.bf16.mxu0 0
  %697 = vmatmul.mubr.bf16.gmra.mrb[0].mxu0 %v641
  %v698 = vpop.f32.mrb[0].mxu0
  %v699 = vadd.f32 0.0, %v698
  %v700 = vpop.f32.mrb[0].mxu0
  %v701 = vpop.f32.mrb[0].mxu0
  %v702 = vadd.f32 0.0, %v701
  %v703 = vpop.f32.mrb[0].mxu0
  %704 = vmatprep.mubr.bf16.mxu0 0
  %705 = vmatmul.mubr.bf16.gmra.mrb[0].mxu0 %v642
  %v706 = vpop.f32.mrb[0].mxu0
  %v707 = vadd.f32 0.0, %v706
  %v708 = vpop.f32.mrb[0].mxu0
  %v709 = vpop.f32.mrb[0].mxu0
  %v710 = vadd.f32 0.0, %v709
  %v711 = vpop.f32.mrb[0].mxu0
  %712 = vmatprep.mubr.bf16.mxu0 0
  %713 = vmatmul.mubr.bf16.gmra.mrb[0].mxu0 %v643
  %v714 = vpop.f32.mrb[0].mxu0
  %v715 = vadd.f32 0.0, %v714
  %v716 = vpop.f32.mrb[0].mxu0
  %v717 = vpop.f32.mrb[0].mxu0
  %v718 = vadd.f32 0.0, %v717
  %v719 = vpop.f32.mrb[0].mxu0
  %720 = vmatprep.mubr.bf16.mxu0 0
  %721 = vmatmul.mubr.bf16.gmra.mrb[0].mxu0 %v644
  %v722 = vpop.f32.mrb[0].mxu0
  %v723 = vadd.f32 0.0, %v722
  %v724 = vpop.f32.mrb[0].mxu0
  %v725 = vpop.f32.mrb[0].mxu0
  %v726 = vadd.f32 0.0, %v725
  %v727 = vpop.f32.mrb[0].mxu0
  %728 = vmatprep.mubr.bf16.mxu0 0
  %729 = vmatmul.mubr.bf16.gmra.mrb[0].mxu0 %v645
  %v730 = vpop.f32.mrb[0].mxu0
  %v731 = vadd.f32 0.0, %v730
  %v732 = vpop.f32.mrb[0].mxu0
  %v733 = vpop.f32.mrb[0].mxu0
  %v734 = vadd.f32 0.0, %v733
  %v735 = vpop.f32.mrb[0].mxu0
  %736 = vmatprep.mubr.bf16.mxu0 0
  %737 = vmatmul.mubr.bf16.gmra.mrb[0].mxu0 %v646
  %v738 = vpop.f32.mrb[0].mxu0
  %v739 = vadd.f32 0.0, %v738
  %v740 = vpop.f32.mrb[0].mxu0
  %v741 = vpop.f32.mrb[0].mxu0
  %v742 = vadd.f32 0.0, %v741
  %v743 = vpop.f32.mrb[0].mxu0
  %744 = vmatprep.mubr.bf16.mxu0 0
  %745 = vmatmul.mubr.bf16.gmra.mrb[0].mxu0 %v647
  %v746 = vpop.f32.mrb[0].mxu0
  %v747 = vadd.f32 0.0, %v746
  %v748 = vpop.f32.mrb[0].mxu0
  %v749 = vpop.f32.mrb[0].mxu0
  %v750 = vadd.f32 0.0, %v749
  %v751 = vpop.f32.mrb[0].mxu0
  %752 = vdwg.mxu0
  %v753 = vrcp.pop %v609
  %v754 = vmul.f32 %v691, %v753
  %v755 = vrcp.pop %v611
  %v756 = vmul.f32 %v694, %v755
  %v757 = vrcp.pop %v613
  %v758 = vmul.f32 %v699, %v757
  %v759 = vrcp.pop %v615
  %v760 = vmul.f32 %v702, %v759
  %v761 = vrcp.pop %v617
  %v762 = vmul.f32 %v707, %v761
  %v763 = vrcp.pop %v619
  %v764 = vmul.f32 %v710, %v763
  %v765 = vrcp.pop %v621
  %v766 = vmul.f32 %v715, %v765
  %v767 = vrcp.pop %v623
  %v768 = vmul.f32 %v718, %v767
  %v769 = vrcp.pop %v625
  %v770 = vmul.f32 %v723, %v769
  %v771 = vrcp.pop %v627
  %v772 = vmul.f32 %v726, %v771
  %v773 = vrcp.pop %v629
  %v774 = vmul.f32 %v731, %v773
  %v775 = vrcp.pop %v631
  %v776 = vmul.f32 %v734, %v775
  %v777 = vrcp.pop %v633
  %v778 = vmul.f32 %v739, %v777
  %v779 = vrcp.pop %v635
  %v780 = vmul.f32 %v742, %v779
  %v781 = vrcp.pop %v637
  %v782 = vmul.f32 %v747, %v781
  %v783 = vrcp.pop %v639
  %v784 = vmul.f32 %v750, %v783
  %v785 = vpack.c.bf16 %v756, %v754
  %v786 = vpack.c.bf16 %v760, %v758
  %v787 = vpack.c.bf16 %v764, %v762
  %v788 = vpack.c.bf16 %v768, %v766
  %v789 = vpack.c.bf16 %v772, %v770
  %v790 = vpack.c.bf16 %v776, %v774
  %v791 = vpack.c.bf16 %v780, %v778
  %v792 = vpack.c.bf16 %v784, %v782
  %v793 = vld [vmem:[%s3] sm:$0xf]
  %v794 = vld [vmem:[%s3 + $0x4] sm:$0xf]
  %v795 = vld [vmem:[%s3 + $0x8] sm:$0xf]
  %v796 = vld [vmem:[%s3 + $0xc] sm:$0xf]
  %v797 = vld [vmem:[%s3 + $0x10] sm:$0xf]
  %v798 = vld [vmem:[%s3 + $0x14] sm:$0xf]
  %v799 = vld [vmem:[%s3 + $0x18] sm:$0xf]
  %v800 = vld [vmem:[%s3 + $0x1c] sm:$0xf]
  %v801 = vld [vmem:[%s3 + $0x20] sm:$0xf]
  %v802 = vld [vmem:[%s3 + $0x24] sm:$0xf]
  %v803 = vld [vmem:[%s3 + $0x28] sm:$0xf]
  %v804 = vld [vmem:[%s3 + $0x2c] sm:$0xf]
  %v805 = vld [vmem:[%s3 + $0x30] sm:$0xf]
  %v806 = vld [vmem:[%s3 + $0x34] sm:$0xf]
  %v807 = vld [vmem:[%s3 + $0x38] sm:$0xf]
  %v808 = vld [vmem:[%s3 + $0x3c] sm:$0xf]
  %v825 = vunpack.c.l.b16 %v793
  %v826 = vunpack.c.l.b16 %v794
  %v827 = vunpack.c.l.b16 %v795
  %v828 = vunpack.c.l.b16 %v796
  %v829 = vunpack.c.l.b16 %v797
  %v830 = vunpack.c.l.b16 %v798
  %v831 = vunpack.c.l.b16 %v799
  %v832 = vunpack.c.l.b16 %v800
  %v833 = vunpack.c.l.b16 %v801
  %v834 = vunpack.c.l.b16 %v802
  %v835 = vunpack.c.l.b16 %v803
  %v836 = vunpack.c.l.b16 %v804
  %v837 = vunpack.c.l.b16 %v805
  %v838 = vunpack.c.l.b16 %v806
  %v839 = vunpack.c.l.b16 %v807
  %v840 = vunpack.c.l.b16 %v808
  %v841 = vpack.c.b16 %v826, %v825
  %v842 = vpack.c.b16 %v828, %v827
  %v843 = vpack.c.b16 %v830, %v829
  %v844 = vpack.c.b16 %v832, %v831
  %v845 = vpack.c.b16 %v834, %v833
  %v846 = vpack.c.b16 %v836, %v835
  %v847 = vpack.c.b16 %v838, %v837
  %v848 = vpack.c.b16 %v840, %v839
  %857 = vmatprep.subr.bf16.mxu0 0
  %858 = vmatpush1.bf16.msra.mxu0 %v841
  %859 = vmatprep.subr.bf16.mxu0 0
  %860 = vmatpush1.bf16.msra.mxu0 %v842
  %861 = vmatprep.subr.bf16.mxu0 0
  %862 = vmatpush1.bf16.msra.mxu0 %v843
  %863 = vmatprep.subr.bf16.mxu0 0
  %864 = vmatpush1.bf16.msra.mxu0 %v844
  %865 = vmatprep.subr.bf16.mxu0 0
  %866 = vmatpush1.bf16.msra.mxu0 %v845
  %867 = vmatprep.subr.bf16.mxu0 0
  %868 = vmatpush1.bf16.msra.mxu0 %v846
  %869 = vmatprep.subr.bf16.mxu0 0
  %870 = vmatpush1.bf16.msra.mxu0 %v847
  %871 = vmatprep.subr.bf16.mxu0 0
  %872 = vmatpush1.bf16.msra.mxu0 %v848
  %873 = vmatprep.subr.bf16.mxu0 0
  %874 = vmatpush1.bf16.msra.mxu0 0
  %875 = vmatprep.subr.bf16.mxu0 0
  %876 = vmatpush1.bf16.msra.mxu0 0
  %877 = vmatprep.subr.bf16.mxu0 0
  %878 = vmatpush1.bf16.msra.mxu0 0
  %879 = vmatprep.subr.bf16.mxu0 0
  %880 = vmatpush1.bf16.msra.mxu0 0
  %881 = vmatprep.subr.bf16.mxu0 0
  %882 = vmatpush1.bf16.msra.mxu0 0
  %883 = vmatprep.subr.bf16.mxu0 0
  %884 = vmatpush1.bf16.msra.mxu0 0
  %885 = vmatprep.subr.bf16.mxu0 0
  %886 = vmatpush1.bf16.msra.mxu0 0
  %887 = vmatprep.subr.bf16.mxu0 0
  %888 = vmatpush1.bf16.msra.mxu0 0
  %889 = vmatprep.mubr.bf16.mxu0 0
  %890 = vmatmul.mubr.bf16.gmra.mrb[0].mxu0 %v785
  %v891 = vpop.f32.mrb[0].mxu0
  %v892 = vadd.f32 0.0, %v891
  %v893 = vpop.f32.mrb[0].mxu0
  %v894 = vpop.f32.mrb[0].mxu0
  %v895 = vadd.f32 0.0, %v894
  %v896 = vpop.f32.mrb[0].mxu0
  %897 = vmatprep.mubr.bf16.mxu0 0
  %898 = vmatmul.mubr.bf16.gmra.mrb[0].mxu0 %v786
  %v899 = vpop.f32.mrb[0].mxu0
  %v900 = vadd.f32 0.0, %v899
  %v901 = vpop.f32.mrb[0].mxu0
  %v902 = vpop.f32.mrb[0].mxu0
  %v903 = vadd.f32 0.0, %v902
  %v904 = vpop.f32.mrb[0].mxu0
  %905 = vmatprep.mubr.bf16.mxu0 0
  %906 = vmatmul.mubr.bf16.gmra.mrb[0].mxu0 %v787
  %v907 = vpop.f32.mrb[0].mxu0
  %v908 = vadd.f32 0.0, %v907
  %v909 = vpop.f32.mrb[0].mxu0
  %v910 = vpop.f32.mrb[0].mxu0
  %v911 = vadd.f32 0.0, %v910
  %v912 = vpop.f32.mrb[0].mxu0
  %913 = vmatprep.mubr.bf16.mxu0 0
  %914 = vmatmul.mubr.bf16.gmra.mrb[0].mxu0 %v788
  %v915 = vpop.f32.mrb[0].mxu0
  %v916 = vadd.f32 0.0, %v915
  %v917 = vpop.f32.mrb[0].mxu0
  %v918 = vpop.f32.mrb[0].mxu0
  %v919 = vadd.f32 0.0, %v918
  %v920 = vpop.f32.mrb[0].mxu0
  %921 = vmatprep.mubr.bf16.mxu0 0
  %922 = vmatmul.mubr.bf16.gmra.mrb[0].mxu0 %v789
  %v923 = vpop.f32.mrb[0].mxu0
  %v924 = vadd.f32 0.0, %v923
  %v925 = vpop.f32.mrb[0].mxu0
  %v926 = vpop.f32.mrb[0].mxu0
  %v927 = vadd.f32 0.0, %v926
  %v928 = vpop.f32.mrb[0].mxu0
  %929 = vmatprep.mubr.bf16.mxu0 0
  %930 = vmatmul.mubr.bf16.gmra.mrb[0].mxu0 %v790
  %v931 = vpop.f32.mrb[0].mxu0
  %v932 = vadd.f32 0.0, %v931
  %v933 = vpop.f32.mrb[0].mxu0
  %v934 = vpop.f32.mrb[0].mxu0
  %v935 = vadd.f32 0.0, %v934
  %v936 = vpop.f32.mrb[0].mxu0
  %937 = vmatprep.mubr.bf16.mxu0 0
  %938 = vmatmul.mubr.bf16.gmra.mrb[0].mxu0 %v791
  %v939 = vpop.f32.mrb[0].mxu0
  %v940 = vadd.f32 0.0, %v939
  %v941 = vpop.f32.mrb[0].mxu0
  %v942 = vpop.f32.mrb[0].mxu0
  %v943 = vadd.f32 0.0, %v942
  %v944 = vpop.f32.mrb[0].mxu0
  %945 = vmatprep.mubr.bf16.mxu0 0
  %946 = vmatmul.mubr.bf16.gmra.mrb[0].mxu0 %v792
  %v947 = vpop.f32.mrb[0].mxu0
  %v948 = vadd.f32 0.0, %v947
  %v949 = vpop.f32.mrb[0].mxu0
  %v950 = vpop.f32.mrb[0].mxu0
  %v951 = vadd.f32 0.0, %v950
  %v952 = vpop.f32.mrb[0].mxu0
  %953 = vdwg.mxu0
  %v954 = vld [vmem:[%s4 + $0x1] sm:$0x1]
  %v955 = vlaneseq
  %v956 = vshrl.u32 %v955, 7
  %v957 = vsub.s32 0, %v956
  %v958 = vrot.slane %v954, %v957
  %v959 = vmul.f32 %v892, %v958
  %v960 = vmul.f32 %v895, %v958
  %v961 = vmul.f32 %v900, %v958
  %v962 = vmul.f32 %v903, %v958
  %v963 = vmul.f32 %v908, %v958
  %v964 = vmul.f32 %v911, %v958
  %v965 = vmul.f32 %v916, %v958
  %v966 = vmul.f32 %v919, %v958
  %v967 = vmul.f32 %v924, %v958
  %v968 = vmul.f32 %v927, %v958
  %v969 = vmul.f32 %v932, %v958
  %v970 = vmul.f32 %v935, %v958
  %v971 = vmul.f32 %v940, %v958
  %v972 = vmul.f32 %v943, %v958
  %v973 = vmul.f32 %v948, %v958
  %v974 = vmul.f32 %v951, %v958
  %975 = vadd.xlane.f32.xlu0 %v959
  %v976 = vpop.xlane.xlu0 %975
  %977 = vadd.xlane.f32.xlu0 %v960
  %v978 = vpop.xlane.xlu0 %977
  %979 = vadd.xlane.f32.xlu0 %v961
  %v980 = vpop.xlane.xlu0 %979
  %981 = vadd.xlane.f32.xlu0 %v962
  %v982 = vpop.xlane.xlu0 %981
  %983 = vadd.xlane.f32.xlu0 %v963
  %v984 = vpop.xlane.xlu0 %983
  %985 = vadd.xlane.f32.xlu0 %v964
  %v986 = vpop.xlane.xlu0 %985
  %987 = vadd.xlane.f32.xlu0 %v965
  %v988 = vpop.xlane.xlu0 %987
  %989 = vadd.xlane.f32.xlu0 %v966
  %v990 = vpop.xlane.xlu0 %989
  %991 = vadd.xlane.f32.xlu0 %v967
  %v992 = vpop.xlane.xlu0 %991
  %993 = vadd.xlane.f32.xlu0 %v968
  %v994 = vpop.xlane.xlu0 %993
  %995 = vadd.xlane.f32.xlu0 %v969
  %v996 = vpop.xlane.xlu0 %995
  %997 = vadd.xlane.f32.xlu0 %v970
  %v998 = vpop.xlane.xlu0 %997
  %999 = vadd.xlane.f32.xlu0 %v971
  %v1000 = vpop.xlane.xlu0 %999
  %1001 = vadd.xlane.f32.xlu0 %v972
  %v1002 = vpop.xlane.xlu0 %1001
  %1003 = vadd.xlane.f32.xlu0 %v973
  %v1004 = vpop.xlane.xlu0 %1003
  %1005 = vadd.xlane.f32.xlu0 %v974
  %v1006 = vpop.xlane.xlu0 %1005
  %v1007 = vld [vmem:[%s4] sm:$0x3]
  %1008 = vmatprep.subr.mxu0 0.0
  %1009 = vmatpush1.xpose.msra.mxu0 %v892
  %1010 = vmatprep.subr.mxu0 0.0
  %1011 = vmatpush1.xpose.msra.mxu0 %v895
  %1012 = vmatprep.subr.mxu0 0.0
  %1013 = vmatpush1.xpose.msra.mxu0 %v900
  %1014 = vmatprep.subr.mxu0 0.0
  %1015 = vmatpush1.xpose.msra.mxu0 %v903
  %1016 = vmatprep.subr.mxu0 0.0
  %1017 = vmatpush1.xpose.msra.mxu0 %v908
  %1018 = vmatprep.subr.mxu0 0.0
  %1019 = vmatpush1.xpose.msra.mxu0 %v911
  %1020 = vmatprep.subr.mxu0 0.0
  %1021 = vmatpush1.xpose.msra.mxu0 %v916
  %1022 = vmatprep.subr.mxu0 0.0
  %1023 = vmatpush1.xpose.msra.mxu0 %v919
  %1024 = vmatprep.subr.mxu0 0.0
  %1025 = vmatpush1.xpose.msra.mxu0 %v924
  %1026 = vmatprep.subr.mxu0 0.0
  %1027 = vmatpush1.xpose.msra.mxu0 %v927
  %1028 = vmatprep.subr.mxu0 0.0
  %1029 = vmatpush1.xpose.msra.mxu0 %v932
  %1030 = vmatprep.subr.mxu0 0.0
  %1031 = vmatpush1.xpose.msra.mxu0 %v935
  %1032 = vmatprep.subr.mxu0 0.0
  %1033 = vmatpush1.xpose.msra.mxu0 %v940
  %1034 = vmatprep.subr.mxu0 0.0
  %1035 = vmatpush1.xpose.msra.mxu0 %v943
  %1036 = vmatprep.subr.mxu0 0.0
  %1037 = vmatpush1.xpose.msra.mxu0 %v948
  %1038 = vmatprep.subr.mxu0 0.0
  %1039 = vmatpush1.xpose.msra.mxu0 %v951
  %1040 = vmatprep.subr.mxu0 0.0
  %1041 = vmatpush1.xpose.msra.mxu0 0.0
  %1042 = vmatprep.subr.mxu0 0.0
  %1043 = vmatpush1.xpose.msra.mxu0 0.0
  %1044 = vmatprep.subr.mxu0 0.0
  %1045 = vmatpush1.xpose.msra.mxu0 0.0
  %1046 = vmatprep.subr.mxu0 0.0
  %1047 = vmatpush1.xpose.msra.mxu0 0.0
  %1048 = vmatprep.subr.mxu0 0.0
  %1049 = vmatpush1.xpose.msra.mxu0 0.0
  %1050 = vmatprep.subr.mxu0 0.0
  %1051 = vmatpush1.xpose.msra.mxu0 0.0
  %1052 = vmatprep.subr.mxu0 0.0
  %1053 = vmatpush1.xpose.msra.mxu0 0.0
  %1054 = vmatprep.subr.mxu0 0.0
  %1055 = vmatpush1.xpose.msra.mxu0 0.0
  %1056 = vmatprep.subr.mxu0 0.0
  %1057 = vmatpush1.xpose.msra.mxu0 0.0
  %1058 = vmatprep.subr.mxu0 0.0
  %1059 = vmatpush1.xpose.msra.mxu0 0.0
  %1060 = vmatprep.subr.mxu0 0.0
  %1061 = vmatpush1.xpose.msra.mxu0 0.0
  %1062 = vmatprep.subr.mxu0 0.0
  %1063 = vmatpush1.xpose.msra.mxu0 0.0
  %1064 = vmatprep.subr.mxu0 0.0
  %1065 = vmatpush1.xpose.msra.mxu0 0.0
  %1066 = vmatprep.subr.mxu0 0.0
  %1067 = vmatpush1.xpose.msra.mxu0 0.0
  %1068 = vmatprep.subr.mxu0 0.0
  %1069 = vmatpush1.xpose.msra.mxu0 0.0
  %1070 = vmatprep.subr.mxu0 0.0
  %1071 = vmatpush1.xpose.msra.mxu0 0.0
  %1072 = vmatprep.mubr.f32.mxu0 0.0
  %1073 = vmatmul.mubr.f32.gmra.mrb[0].mxu0 %v1007
  %v1074 = vpop.f32.mrb[0].mxu0
  %v1075 = vadd.f32 0.0, %v1074
  %v1076 = vpop.f32.mrb[0].mxu0
  %1077 = vdwg.mxu0
  %v1078 = vadd.f32 %v1075, %v43
  %v1079 = vsel %vm338, %v1078, -inf
  %1080 = vmax.xlane.f32.xlu0 %v1079
  %v1081 = vpop.xlane.xlu0 %1080
  %v1082 = vrot.slane %v1081, 4
  %v1083 = vmax.f32 %v1081, %v1082
  %v1084 = vrot.slane %v1083, 2
  %v1085 = vmax.f32 %v1083, %v1084
  %v1086 = vrot.slane %v1085, 1
  %v1087 = vmax.f32 %v1085, %v1086
  %s1088 = vtos %v1087
  %v1089 = vstv %s1088
  %v1090 = vadd.f32 %v976, %v1089
  %v1091 = vadd.f32 %v978, %v1089
  %v1092 = vadd.f32 %v980, %v1089
  %v1093 = vadd.f32 %v982, %v1089
  %v1094 = vadd.f32 %v984, %v1089
  %v1095 = vadd.f32 %v986, %v1089
  %v1096 = vadd.f32 %v988, %v1089
  %v1097 = vadd.f32 %v990, %v1089
  %v1098 = vadd.f32 %v992, %v1089
  %v1099 = vadd.f32 %v994, %v1089
  %v1100 = vadd.f32 %v996, %v1089
  %v1101 = vadd.f32 %v998, %v1089
  %v1102 = vadd.f32 %v1000, %v1089
  %v1103 = vadd.f32 %v1002, %v1089
  %v1104 = vadd.f32 %v1004, %v1089
  %v1105 = vadd.f32 %v1006, %v1089
  %vm1106 = vcmp.ge.f32.partialorder %v1090, 0.0
  %vm1107 = vcmp.ge.f32.partialorder %v1091, 0.0
  %vm1108 = vcmp.ge.f32.partialorder %v1092, 0.0
  %vm1109 = vcmp.ge.f32.partialorder %v1093, 0.0
  %vm1110 = vcmp.ge.f32.partialorder %v1094, 0.0
  %vm1111 = vcmp.ge.f32.partialorder %v1095, 0.0
  %vm1112 = vcmp.ge.f32.partialorder %v1096, 0.0
  %vm1113 = vcmp.ge.f32.partialorder %v1097, 0.0
  %vm1114 = vcmp.ge.f32.partialorder %v1098, 0.0
  %vm1115 = vcmp.ge.f32.partialorder %v1099, 0.0
  %vm1116 = vcmp.ge.f32.partialorder %v1100, 0.0
  %vm1117 = vcmp.ge.f32.partialorder %v1101, 0.0
  %vm1118 = vcmp.ge.f32.partialorder %v1102, 0.0
  %vm1119 = vcmp.ge.f32.partialorder %v1103, 0.0
  %vm1120 = vcmp.ge.f32.partialorder %v1104, 0.0
  %vm1121 = vcmp.ge.f32.partialorder %v1105, 0.0
  %v1122 = vmul.f32 %v1090, 0.2
  %v1123 = vmul.f32 %v1091, 0.2
  %v1124 = vmul.f32 %v1092, 0.2
  %v1125 = vmul.f32 %v1093, 0.2
  %v1126 = vmul.f32 %v1094, 0.2
  %v1127 = vmul.f32 %v1095, 0.2
  %v1128 = vmul.f32 %v1096, 0.2
  %v1129 = vmul.f32 %v1097, 0.2
  %v1130 = vmul.f32 %v1098, 0.2
  %v1131 = vmul.f32 %v1099, 0.2
  %v1132 = vmul.f32 %v1100, 0.2
  %v1133 = vmul.f32 %v1101, 0.2
  %v1134 = vmul.f32 %v1102, 0.2
  %v1135 = vmul.f32 %v1103, 0.2
  %v1136 = vmul.f32 %v1104, 0.2
  %v1137 = vmul.f32 %v1105, 0.2
  %v1138 = vsel %vm1106, %v1090, %v1122
  %v1139 = vsel %vm1107, %v1091, %v1123
  %v1140 = vsel %vm1108, %v1092, %v1124
  %v1141 = vsel %vm1109, %v1093, %v1125
  %v1142 = vsel %vm1110, %v1094, %v1126
  %v1143 = vsel %vm1111, %v1095, %v1127
  %v1144 = vsel %vm1112, %v1096, %v1128
  %v1145 = vsel %vm1113, %v1097, %v1129
  %v1146 = vsel %vm1114, %v1098, %v1130
  %v1147 = vsel %vm1115, %v1099, %v1131
  %v1148 = vsel %vm1116, %v1100, %v1132
  %v1149 = vsel %vm1117, %v1101, %v1133
  %v1150 = vsel %vm1118, %v1102, %v1134
  %v1151 = vsel %vm1119, %v1103, %v1135
  %v1152 = vsel %vm1120, %v1104, %v1136
  %v1153 = vsel %vm1121, %v1105, %v1137
  %v1154 = vsub.f32 %v1090, %v1138
  %v1155 = vsub.f32 %v1091, %v1139
  %v1156 = vsub.f32 %v1092, %v1140
  %v1157 = vsub.f32 %v1093, %v1141
  %v1158 = vsub.f32 %v1094, %v1142
  %v1159 = vsub.f32 %v1095, %v1143
  %v1160 = vsub.f32 %v1096, %v1144
  %v1161 = vsub.f32 %v1097, %v1145
  %v1162 = vsub.f32 %v1098, %v1146
  %v1163 = vsub.f32 %v1099, %v1147
  %v1164 = vsub.f32 %v1100, %v1148
  %v1165 = vsub.f32 %v1101, %v1149
  %v1166 = vsub.f32 %v1102, %v1150
  %v1167 = vsub.f32 %v1103, %v1151
  %v1168 = vsub.f32 %v1104, %v1152
  %v1169 = vsub.f32 %v1105, %v1153
  %v1170 = vmul.f32 %v1154, 1.442695
  %v1171 = vpow.pop %v1170
  %v1172 = vmul.f32 %v1155, 1.442695
  %v1173 = vpow.pop %v1172
  %v1174 = vmul.f32 %v1156, 1.442695
  %v1175 = vpow.pop %v1174
  %v1176 = vmul.f32 %v1157, 1.442695
  %v1177 = vpow.pop %v1176
  %v1178 = vmul.f32 %v1158, 1.442695
  %v1179 = vpow.pop %v1178
  %v1180 = vmul.f32 %v1159, 1.442695
  %v1181 = vpow.pop %v1180
  %v1182 = vmul.f32 %v1160, 1.442695
  %v1183 = vpow.pop %v1182
  %v1184 = vmul.f32 %v1161, 1.442695
  %v1185 = vpow.pop %v1184
  %v1186 = vmul.f32 %v1162, 1.442695
  %v1187 = vpow.pop %v1186
  %v1188 = vmul.f32 %v1163, 1.442695
  %v1189 = vpow.pop %v1188
  %v1190 = vmul.f32 %v1164, 1.442695
  %v1191 = vpow.pop %v1190
  %v1192 = vmul.f32 %v1165, 1.442695
  %v1193 = vpow.pop %v1192
  %v1194 = vmul.f32 %v1166, 1.442695
  %v1195 = vpow.pop %v1194
  %v1196 = vmul.f32 %v1167, 1.442695
  %v1197 = vpow.pop %v1196
  %v1198 = vmul.f32 %v1168, 1.442695
  %v1199 = vpow.pop %v1198
  %v1200 = vmul.f32 %v1169, 1.442695
  %v1201 = vpow.pop %v1200
  %v1202 = vsub.f32 %v1122, %v1138
  %v1203 = vsub.f32 %v1123, %v1139
  %v1204 = vsub.f32 %v1124, %v1140
  %v1205 = vsub.f32 %v1125, %v1141
  %v1206 = vsub.f32 %v1126, %v1142
  %v1207 = vsub.f32 %v1127, %v1143
  %v1208 = vsub.f32 %v1128, %v1144
  %v1209 = vsub.f32 %v1129, %v1145
  %v1210 = vsub.f32 %v1130, %v1146
  %v1211 = vsub.f32 %v1131, %v1147
  %v1212 = vsub.f32 %v1132, %v1148
  %v1213 = vsub.f32 %v1133, %v1149
  %v1214 = vsub.f32 %v1134, %v1150
  %v1215 = vsub.f32 %v1135, %v1151
  %v1216 = vsub.f32 %v1136, %v1152
  %v1217 = vsub.f32 %v1137, %v1153
  %v1218 = vmul.f32 %v1202, 1.442695
  %v1219 = vpow.pop %v1218
  %v1220 = vmul.f32 %v1203, 1.442695
  %v1221 = vpow.pop %v1220
  %v1222 = vmul.f32 %v1204, 1.442695
  %v1223 = vpow.pop %v1222
  %v1224 = vmul.f32 %v1205, 1.442695
  %v1225 = vpow.pop %v1224
  %v1226 = vmul.f32 %v1206, 1.442695
  %v1227 = vpow.pop %v1226
  %v1228 = vmul.f32 %v1207, 1.442695
  %v1229 = vpow.pop %v1228
  %v1230 = vmul.f32 %v1208, 1.442695
  %v1231 = vpow.pop %v1230
  %v1232 = vmul.f32 %v1209, 1.442695
  %v1233 = vpow.pop %v1232
  %v1234 = vmul.f32 %v1210, 1.442695
  %v1235 = vpow.pop %v1234
  %v1236 = vmul.f32 %v1211, 1.442695
  %v1237 = vpow.pop %v1236
  %v1238 = vmul.f32 %v1212, 1.442695
  %v1239 = vpow.pop %v1238
  %v1240 = vmul.f32 %v1213, 1.442695
  %v1241 = vpow.pop %v1240
  %v1242 = vmul.f32 %v1214, 1.442695
  %v1243 = vpow.pop %v1242
  %v1244 = vmul.f32 %v1215, 1.442695
  %v1245 = vpow.pop %v1244
  %v1246 = vmul.f32 %v1216, 1.442695
  %v1247 = vpow.pop %v1246
  %v1248 = vmul.f32 %v1217, 1.442695
  %v1249 = vpow.pop %v1248
  %v1250 = vsub.f32 %v1078, %v1089
  %v1251 = vmul.f32 %v1250, 1.442695
  %v1252 = vpow.pop %v1251
  %v1253 = vmul.f32 %v1250, 0.2
  %v1254 = vmul.f32 %v1253, 1.442695
  %v1255 = vpow.pop %v1254
  %v1256 = vlaneseq
  %v1257 = vshrl.u32 %v1256, 7
  %v1258 = vsub.s32 0, %v1257
  %v1259 = vrot.slane %v1078, %v1258
  %v1260 = vadd.f32 %v976, %v1259
  %v1261 = vadd.f32 %v978, %v1259
  %v1262 = vadd.f32 %v980, %v1259
  %v1263 = vadd.f32 %v982, %v1259
  %v1264 = vadd.f32 %v984, %v1259
  %v1265 = vadd.f32 %v986, %v1259
  %v1266 = vadd.f32 %v988, %v1259
  %v1267 = vadd.f32 %v990, %v1259
  %v1268 = vadd.f32 %v992, %v1259
  %v1269 = vadd.f32 %v994, %v1259
  %v1270 = vadd.f32 %v996, %v1259
  %v1271 = vadd.f32 %v998, %v1259
  %v1272 = vadd.f32 %v1000, %v1259
  %v1273 = vadd.f32 %v1002, %v1259
  %v1274 = vadd.f32 %v1004, %v1259
  %v1275 = vadd.f32 %v1006, %v1259
  %vm1276 = vcmp.ge.f32.partialorder %v1260, 0.0
  %vm1277 = vcmp.ge.f32.partialorder %v1261, 0.0
  %vm1278 = vcmp.ge.f32.partialorder %v1262, 0.0
  %vm1279 = vcmp.ge.f32.partialorder %v1263, 0.0
  %vm1280 = vcmp.ge.f32.partialorder %v1264, 0.0
  %vm1281 = vcmp.ge.f32.partialorder %v1265, 0.0
  %vm1282 = vcmp.ge.f32.partialorder %v1266, 0.0
  %vm1283 = vcmp.ge.f32.partialorder %v1267, 0.0
  %vm1284 = vcmp.ge.f32.partialorder %v1268, 0.0
  %vm1285 = vcmp.ge.f32.partialorder %v1269, 0.0
  %vm1286 = vcmp.ge.f32.partialorder %v1270, 0.0
  %vm1287 = vcmp.ge.f32.partialorder %v1271, 0.0
  %vm1288 = vcmp.ge.f32.partialorder %v1272, 0.0
  %vm1289 = vcmp.ge.f32.partialorder %v1273, 0.0
  %vm1290 = vcmp.ge.f32.partialorder %v1274, 0.0
  %vm1291 = vcmp.ge.f32.partialorder %v1275, 0.0
  %v1292 = vlaneseq
  %v1293 = vshrl.u32 %v1292, 7
  %v1294 = vsub.s32 0, %v1293
  %v1295 = vrot.slane %v1252, %v1294
  %v1296 = vmul.f32 %v1171, %v1295
  %v1297 = vmul.f32 %v1173, %v1295
  %v1298 = vmul.f32 %v1175, %v1295
  %v1299 = vmul.f32 %v1177, %v1295
  %v1300 = vmul.f32 %v1179, %v1295
  %v1301 = vmul.f32 %v1181, %v1295
  %v1302 = vmul.f32 %v1183, %v1295
  %v1303 = vmul.f32 %v1185, %v1295
  %v1304 = vmul.f32 %v1187, %v1295
  %v1305 = vmul.f32 %v1189, %v1295
  %v1306 = vmul.f32 %v1191, %v1295
  %v1307 = vmul.f32 %v1193, %v1295
  %v1308 = vmul.f32 %v1195, %v1295
  %v1309 = vmul.f32 %v1197, %v1295
  %v1310 = vmul.f32 %v1199, %v1295
  %v1311 = vmul.f32 %v1201, %v1295
  %v1312 = vlaneseq
  %v1313 = vshrl.u32 %v1312, 7
  %v1314 = vsub.s32 0, %v1313
  %v1315 = vrot.slane %v1255, %v1314
  %v1316 = vmul.f32 %v1219, %v1315
  %v1317 = vmul.f32 %v1221, %v1315
  %v1318 = vmul.f32 %v1223, %v1315
  %v1319 = vmul.f32 %v1225, %v1315
  %v1320 = vmul.f32 %v1227, %v1315
  %v1321 = vmul.f32 %v1229, %v1315
  %v1322 = vmul.f32 %v1231, %v1315
  %v1323 = vmul.f32 %v1233, %v1315
  %v1324 = vmul.f32 %v1235, %v1315
  %v1325 = vmul.f32 %v1237, %v1315
  %v1326 = vmul.f32 %v1239, %v1315
  %v1327 = vmul.f32 %v1241, %v1315
  %v1328 = vmul.f32 %v1243, %v1315
  %v1329 = vmul.f32 %v1245, %v1315
  %v1330 = vmul.f32 %v1247, %v1315
  %v1331 = vmul.f32 %v1249, %v1315
  %v1332 = vsel %vm1276, %v1296, %v1316
  %v1333 = vsel %vm1277, %v1297, %v1317
  %v1334 = vsel %vm1278, %v1298, %v1318
  %v1335 = vsel %vm1279, %v1299, %v1319
  %v1336 = vsel %vm1280, %v1300, %v1320
  %v1337 = vsel %vm1281, %v1301, %v1321
  %v1338 = vsel %vm1282, %v1302, %v1322
  %v1339 = vsel %vm1283, %v1303, %v1323
  %v1340 = vsel %vm1284, %v1304, %v1324
  %v1341 = vsel %vm1285, %v1305, %v1325
  %v1342 = vsel %vm1286, %v1306, %v1326
  %v1343 = vsel %vm1287, %v1307, %v1327
  %v1344 = vsel %vm1288, %v1308, %v1328
  %v1345 = vsel %vm1289, %v1309, %v1329
  %v1346 = vsel %vm1290, %v1310, %v1330
  %v1347 = vsel %vm1291, %v1311, %v1331
  %1348 = vadd.xlane.f32.xlu0 %v1332
  %v1349 = vpop.xlane.xlu0 %1348
  %1350 = vadd.xlane.f32.xlu0 %v1333
  %v1351 = vpop.xlane.xlu0 %1350
  %1352 = vadd.xlane.f32.xlu0 %v1334
  %v1353 = vpop.xlane.xlu0 %1352
  %1354 = vadd.xlane.f32.xlu0 %v1335
  %v1355 = vpop.xlane.xlu0 %1354
  %1356 = vadd.xlane.f32.xlu0 %v1336
  %v1357 = vpop.xlane.xlu0 %1356
  %1358 = vadd.xlane.f32.xlu0 %v1337
  %v1359 = vpop.xlane.xlu0 %1358
  %1360 = vadd.xlane.f32.xlu0 %v1338
  %v1361 = vpop.xlane.xlu0 %1360
  %1362 = vadd.xlane.f32.xlu0 %v1339
  %v1363 = vpop.xlane.xlu0 %1362
  %1364 = vadd.xlane.f32.xlu0 %v1340
  %v1365 = vpop.xlane.xlu0 %1364
  %1366 = vadd.xlane.f32.xlu0 %v1341
  %v1367 = vpop.xlane.xlu0 %1366
  %1368 = vadd.xlane.f32.xlu0 %v1342
  %v1369 = vpop.xlane.xlu0 %1368
  %1370 = vadd.xlane.f32.xlu0 %v1343
  %v1371 = vpop.xlane.xlu0 %1370
  %1372 = vadd.xlane.f32.xlu0 %v1344
  %v1373 = vpop.xlane.xlu0 %1372
  %1374 = vadd.xlane.f32.xlu0 %v1345
  %v1375 = vpop.xlane.xlu0 %1374
  %1376 = vadd.xlane.f32.xlu0 %v1346
  %v1377 = vpop.xlane.xlu0 %1376
  %1378 = vadd.xlane.f32.xlu0 %v1347
  %v1379 = vpop.xlane.xlu0 %1378
  %v1380 = vpack.c.bf16 %v1333, %v1332
  %v1381 = vpack.c.bf16 %v1335, %v1334
  %v1382 = vpack.c.bf16 %v1337, %v1336
  %v1383 = vpack.c.bf16 %v1339, %v1338
  %v1384 = vpack.c.bf16 %v1341, %v1340
  %v1385 = vpack.c.bf16 %v1343, %v1342
  %v1386 = vpack.c.bf16 %v1345, %v1344
  %v1387 = vpack.c.bf16 %v1347, %v1346
  %v1388 = vpack.c.bf16 %v895, %v892
  %v1389 = vpack.c.bf16 %v903, %v900
  %v1390 = vpack.c.bf16 %v911, %v908
  %v1391 = vpack.c.bf16 %v919, %v916
  %v1392 = vpack.c.bf16 %v927, %v924
  %v1393 = vpack.c.bf16 %v935, %v932
  %v1394 = vpack.c.bf16 %v943, %v940
  %v1395 = vpack.c.bf16 %v951, %v948
  %1396 = vmatprep.subr.bf16.mxu0 0
  %1397 = vmatpush1.bf16.msra.mxu0 %v1388
  %1398 = vmatprep.subr.bf16.mxu0 0
  %1399 = vmatpush1.bf16.msra.mxu0 %v1389
  %1400 = vmatprep.subr.bf16.mxu0 0
  %1401 = vmatpush1.bf16.msra.mxu0 %v1390
  %1402 = vmatprep.subr.bf16.mxu0 0
  %1403 = vmatpush1.bf16.msra.mxu0 %v1391
  %1404 = vmatprep.subr.bf16.mxu0 0
  %1405 = vmatpush1.bf16.msra.mxu0 %v1392
  %1406 = vmatprep.subr.bf16.mxu0 0
  %1407 = vmatpush1.bf16.msra.mxu0 %v1393
  %1408 = vmatprep.subr.bf16.mxu0 0
  %1409 = vmatpush1.bf16.msra.mxu0 %v1394
  %1410 = vmatprep.subr.bf16.mxu0 0
  %1411 = vmatpush1.bf16.msra.mxu0 %v1395
  %1412 = vmatprep.subr.bf16.mxu0 0
  %1413 = vmatpush1.bf16.msra.mxu0 0
  %1414 = vmatprep.subr.bf16.mxu0 0
  %1415 = vmatpush1.bf16.msra.mxu0 0
  %1416 = vmatprep.subr.bf16.mxu0 0
  %1417 = vmatpush1.bf16.msra.mxu0 0
  %1418 = vmatprep.subr.bf16.mxu0 0
  %1419 = vmatpush1.bf16.msra.mxu0 0
  %1420 = vmatprep.subr.bf16.mxu0 0
  %1421 = vmatpush1.bf16.msra.mxu0 0
  %1422 = vmatprep.subr.bf16.mxu0 0
  %1423 = vmatpush1.bf16.msra.mxu0 0
  %1424 = vmatprep.subr.bf16.mxu0 0
  %1425 = vmatpush1.bf16.msra.mxu0 0
  %1426 = vmatprep.subr.bf16.mxu0 0
  %1427 = vmatpush1.bf16.msra.mxu0 0
  %1428 = vmatprep.mubr.bf16.mxu0 0
  %1429 = vmatmul.mubr.bf16.gmra.mrb[0].mxu0 %v1380
  %v1430 = vpop.f32.mrb[0].mxu0
  %v1431 = vadd.f32 0.0, %v1430
  %v1432 = vpop.f32.mrb[0].mxu0
  %v1433 = vpop.f32.mrb[0].mxu0
  %v1434 = vadd.f32 0.0, %v1433
  %v1435 = vpop.f32.mrb[0].mxu0
  %1436 = vmatprep.mubr.bf16.mxu0 0
  %1437 = vmatmul.mubr.bf16.gmra.mrb[0].mxu0 %v1381
  %v1438 = vpop.f32.mrb[0].mxu0
  %v1439 = vadd.f32 0.0, %v1438
  %v1440 = vpop.f32.mrb[0].mxu0
  %v1441 = vpop.f32.mrb[0].mxu0
  %v1442 = vadd.f32 0.0, %v1441
  %v1443 = vpop.f32.mrb[0].mxu0
  %1444 = vmatprep.mubr.bf16.mxu0 0
  %1445 = vmatmul.mubr.bf16.gmra.mrb[0].mxu0 %v1382
  %v1446 = vpop.f32.mrb[0].mxu0
  %v1447 = vadd.f32 0.0, %v1446
  %v1448 = vpop.f32.mrb[0].mxu0
  %v1449 = vpop.f32.mrb[0].mxu0
  %v1450 = vadd.f32 0.0, %v1449
  %v1451 = vpop.f32.mrb[0].mxu0
  %1452 = vmatprep.mubr.bf16.mxu0 0
  %1453 = vmatmul.mubr.bf16.gmra.mrb[0].mxu0 %v1383
  %v1454 = vpop.f32.mrb[0].mxu0
  %v1455 = vadd.f32 0.0, %v1454
  %v1456 = vpop.f32.mrb[0].mxu0
  %v1457 = vpop.f32.mrb[0].mxu0
  %v1458 = vadd.f32 0.0, %v1457
  %v1459 = vpop.f32.mrb[0].mxu0
  %1460 = vmatprep.mubr.bf16.mxu0 0
  %1461 = vmatmul.mubr.bf16.gmra.mrb[0].mxu0 %v1384
  %v1462 = vpop.f32.mrb[0].mxu0
  %v1463 = vadd.f32 0.0, %v1462
  %v1464 = vpop.f32.mrb[0].mxu0
  %v1465 = vpop.f32.mrb[0].mxu0
  %v1466 = vadd.f32 0.0, %v1465
  %v1467 = vpop.f32.mrb[0].mxu0
  %1468 = vmatprep.mubr.bf16.mxu0 0
  %1469 = vmatmul.mubr.bf16.gmra.mrb[0].mxu0 %v1385
  %v1470 = vpop.f32.mrb[0].mxu0
  %v1471 = vadd.f32 0.0, %v1470
  %v1472 = vpop.f32.mrb[0].mxu0
  %v1473 = vpop.f32.mrb[0].mxu0
  %v1474 = vadd.f32 0.0, %v1473
  %v1475 = vpop.f32.mrb[0].mxu0
  %1476 = vmatprep.mubr.bf16.mxu0 0
  %1477 = vmatmul.mubr.bf16.gmra.mrb[0].mxu0 %v1386
  %v1478 = vpop.f32.mrb[0].mxu0
  %v1479 = vadd.f32 0.0, %v1478
  %v1480 = vpop.f32.mrb[0].mxu0
  %v1481 = vpop.f32.mrb[0].mxu0
  %v1482 = vadd.f32 0.0, %v1481
  %v1483 = vpop.f32.mrb[0].mxu0
  %1484 = vmatprep.mubr.bf16.mxu0 0
  %1485 = vmatmul.mubr.bf16.gmra.mrb[0].mxu0 %v1387
  %v1486 = vpop.f32.mrb[0].mxu0
  %v1487 = vadd.f32 0.0, %v1486
  %v1488 = vpop.f32.mrb[0].mxu0
  %v1489 = vpop.f32.mrb[0].mxu0
  %v1490 = vadd.f32 0.0, %v1489
  %v1491 = vpop.f32.mrb[0].mxu0
  %1492 = vdwg.mxu0
  %v1493 = vrcp.pop %v1349
  %v1494 = vmul.f32 %v1431, %v1493
  %v1495 = vrcp.pop %v1351
  %v1496 = vmul.f32 %v1434, %v1495
  %v1497 = vrcp.pop %v1353
  %v1498 = vmul.f32 %v1439, %v1497
  %v1499 = vrcp.pop %v1355
  %v1500 = vmul.f32 %v1442, %v1499
  %v1501 = vrcp.pop %v1357
  %v1502 = vmul.f32 %v1447, %v1501
  %v1503 = vrcp.pop %v1359
  %v1504 = vmul.f32 %v1450, %v1503
  %v1505 = vrcp.pop %v1361
  %v1506 = vmul.f32 %v1455, %v1505
  %v1507 = vrcp.pop %v1363
  %v1508 = vmul.f32 %v1458, %v1507
  %v1509 = vrcp.pop %v1365
  %v1510 = vmul.f32 %v1463, %v1509
  %v1511 = vrcp.pop %v1367
  %v1512 = vmul.f32 %v1466, %v1511
  %v1513 = vrcp.pop %v1369
  %v1514 = vmul.f32 %v1471, %v1513
  %v1515 = vrcp.pop %v1371
  %v1516 = vmul.f32 %v1474, %v1515
  %v1517 = vrcp.pop %v1373
  %v1518 = vmul.f32 %v1479, %v1517
  %v1519 = vrcp.pop %v1375
  %v1520 = vmul.f32 %v1482, %v1519
  %v1521 = vrcp.pop %v1377
  %v1522 = vmul.f32 %v1487, %v1521
  %v1523 = vrcp.pop %v1379
  %v1524 = vmul.f32 %v1490, %v1523
  %v1525 = vld [vmem:[%s6] sm:$0xff]
  %v1526 = vld [vmem:[%s6 + $0x8] sm:$0xff]
  %v1527 = vld [vmem:[%s6 + $0x10] sm:$0xff]
  %v1528 = vld [vmem:[%s6 + $0x18] sm:$0xff]
  %v1529 = vld [vmem:[%s6 + $0x20] sm:$0xff]
  %v1530 = vld [vmem:[%s6 + $0x28] sm:$0xff]
  %v1531 = vld [vmem:[%s6 + $0x30] sm:$0xff]
  %v1532 = vld [vmem:[%s6 + $0x38] sm:$0xff]
  %v1533 = vld [vmem:[%s6 + $0x40] sm:$0xff]
  %v1534 = vld [vmem:[%s6 + $0x48] sm:$0xff]
  %v1535 = vld [vmem:[%s6 + $0x50] sm:$0xff]
  %v1536 = vld [vmem:[%s6 + $0x58] sm:$0xff]
  %v1537 = vld [vmem:[%s6 + $0x60] sm:$0xff]
  %v1538 = vld [vmem:[%s6 + $0x68] sm:$0xff]
  %v1539 = vld [vmem:[%s6 + $0x70] sm:$0xff]
  %v1540 = vld [vmem:[%s6 + $0x78] sm:$0xff]
  %1542 = vset.pattern.permute.xlu0 0
  %1543 = vperm.xlu0 %1542, %v1525
  %v1544 = vpop.permute.xlu0 %1543
  %1547 = vset.pattern.permute.xlu0 0
  %1548 = vperm.xlu0 %1547, %v1526
  %v1549 = vpop.permute.xlu0 %1548
  %1552 = vset.pattern.permute.xlu0 0
  %1553 = vperm.xlu0 %1552, %v1527
  %v1554 = vpop.permute.xlu0 %1553
  %1557 = vset.pattern.permute.xlu0 0
  %1558 = vperm.xlu0 %1557, %v1528
  %v1559 = vpop.permute.xlu0 %1558
  %1562 = vset.pattern.permute.xlu0 0
  %1563 = vperm.xlu0 %1562, %v1529
  %v1564 = vpop.permute.xlu0 %1563
  %1567 = vset.pattern.permute.xlu0 0
  %1568 = vperm.xlu0 %1567, %v1530
  %v1569 = vpop.permute.xlu0 %1568
  %1572 = vset.pattern.permute.xlu0 0
  %1573 = vperm.xlu0 %1572, %v1531
  %v1574 = vpop.permute.xlu0 %1573
  %1577 = vset.pattern.permute.xlu0 0
  %1578 = vperm.xlu0 %1577, %v1532
  %v1579 = vpop.permute.xlu0 %1578
  %1582 = vset.pattern.permute.xlu0 0
  %1583 = vperm.xlu0 %1582, %v1533
  %v1584 = vpop.permute.xlu0 %1583
  %1587 = vset.pattern.permute.xlu0 0
  %1588 = vperm.xlu0 %1587, %v1534
  %v1589 = vpop.permute.xlu0 %1588
  %1592 = vset.pattern.permute.xlu0 0
  %1593 = vperm.xlu0 %1592, %v1535
  %v1594 = vpop.permute.xlu0 %1593
  %1597 = vset.pattern.permute.xlu0 0
  %1598 = vperm.xlu0 %1597, %v1536
  %v1599 = vpop.permute.xlu0 %1598
  %1602 = vset.pattern.permute.xlu0 0
  %1603 = vperm.xlu0 %1602, %v1537
  %v1604 = vpop.permute.xlu0 %1603
  %1607 = vset.pattern.permute.xlu0 0
  %1608 = vperm.xlu0 %1607, %v1538
  %v1609 = vpop.permute.xlu0 %1608
  %1612 = vset.pattern.permute.xlu0 0
  %1613 = vperm.xlu0 %1612, %v1539
  %v1614 = vpop.permute.xlu0 %1613
  %1617 = vset.pattern.permute.xlu0 0
  %1618 = vperm.xlu0 %1617, %v1540
  %v1619 = vpop.permute.xlu0 %1618
  %v1621 = vmul.f32 %v1544, %v27
  %v1622 = vmul.f32 %v1549, %v28
  %v1623 = vmul.f32 %v1554, %v29
  %v1624 = vmul.f32 %v1559, %v30
  %v1625 = vmul.f32 %v1564, %v31
  %v1626 = vmul.f32 %v1569, %v32
  %v1627 = vmul.f32 %v1574, %v33
  %v1628 = vmul.f32 %v1579, %v34
  %v1629 = vmul.f32 %v1584, %v35
  %v1630 = vmul.f32 %v1589, %v36
  %v1631 = vmul.f32 %v1594, %v37
  %v1632 = vmul.f32 %v1599, %v38
  %v1633 = vmul.f32 %v1604, %v39
  %v1634 = vmul.f32 %v1609, %v40
  %v1635 = vmul.f32 %v1614, %v41
  %v1636 = vmul.f32 %v1619, %v42
  %v1637 = vadd.f32 %v1494, %v1621
  %v1638 = vadd.f32 %v1496, %v1622
  %v1639 = vadd.f32 %v1498, %v1623
  %v1640 = vadd.f32 %v1500, %v1624
  %v1641 = vadd.f32 %v1502, %v1625
  %v1642 = vadd.f32 %v1504, %v1626
  %v1643 = vadd.f32 %v1506, %v1627
  %v1644 = vadd.f32 %v1508, %v1628
  %v1645 = vadd.f32 %v1510, %v1629
  %v1646 = vadd.f32 %v1512, %v1630
  %v1647 = vadd.f32 %v1514, %v1631
  %v1648 = vadd.f32 %v1516, %v1632
  %v1649 = vadd.f32 %v1518, %v1633
  %v1650 = vadd.f32 %v1520, %v1634
  %v1651 = vadd.f32 %v1522, %v1635
  %v1652 = vadd.f32 %v1524, %v1636
  %1653 = vst [vmem:[%s7] sm:$0xff] %v1637
  %1654 = vst [vmem:[%s7 + $0x8] sm:$0xff] %v1638
  %1655 = vst [vmem:[%s7 + $0x10] sm:$0xff] %v1639
  %1656 = vst [vmem:[%s7 + $0x18] sm:$0xff] %v1640
  %1657 = vst [vmem:[%s7 + $0x20] sm:$0xff] %v1641
  %1658 = vst [vmem:[%s7 + $0x28] sm:$0xff] %v1642
  %1659 = vst [vmem:[%s7 + $0x30] sm:$0xff] %v1643
  %1660 = vst [vmem:[%s7 + $0x38] sm:$0xff] %v1644
  %1661 = vst [vmem:[%s7 + $0x40] sm:$0xff] %v1645
  %1662 = vst [vmem:[%s7 + $0x48] sm:$0xff] %v1646
  %1663 = vst [vmem:[%s7 + $0x50] sm:$0xff] %v1647
  %1664 = vst [vmem:[%s7 + $0x58] sm:$0xff] %v1648
  %1665 = vst [vmem:[%s7 + $0x60] sm:$0xff] %v1649
  %1666 = vst [vmem:[%s7 + $0x68] sm:$0xff] %v1650
  %1667 = vst [vmem:[%s7 + $0x70] sm:$0xff] %v1651
  %1668 = vst [vmem:[%s7 + $0x78] sm:$0xff] %v1652
  // Predicated region
  $region30: #{expression_single_eva_forward.1} parent=0 // pred_check
    _
  $region31: #{expression_single_eva_forward.1} parent=0 // pred_check_branch
    %1670 = sbr.rel (0) target = $region33
  $region32: #{expression_single_eva_forward.1} parent=0 // pred_region
    _
  $region33: #{expression_single_eva_forward.1} parent=0 // pred_fallthru
    _
  // Predicated region
  $region34: #{expression_single_eva_forward.1} parent=0 // pred_check
    _
  $region35: #{expression_single_eva_forward.1} parent=0 // pred_check_branch
    %1672 = sbr.rel (0) target = $region37
  $region36: #{expression_single_eva_forward.1} parent=0 // pred_region
    _
  $region37: #{expression_single_eva_forward.1} parent=0 // pred_fallthru
    _

</llo_original>
